<compile_context>
chip_gen: v5e
topology: v5e:2x2
jax: 0.10.0
libtpu: 0.0.40
codegen_flags: <defaults>
</compile_context>

<pallas_src>
import functools

import jax
import jax.numpy as jnp
from jax.experimental import pallas as pl
from jax.experimental.pallas import tpu as pltpu

IN_F = 1024
HID_F = 512
OUT_F = 10
OUT_PAD = 128  # lane-dense output width (multiple of 128)


def _round_up(n, m):
    return -(-n // m) * m


def _choose_bm(B, block_m):
    # f32 x tiles -> sublane alignment of 8 on the batch dim.
    bm = min(block_m, _round_up(B, 8))
    # Cap so double-buffered f32 x + out tiles stay under v5e's default scoped VMEM.
    bm = min(bm, 1024)
    # v7x has 2 TensorCores: if the batch is big enough to split, make sure the
    # "parallel" batch axis has at least 2 grid steps so both cores get work.
    if B > 8 and _round_up(B, bm) // bm < 2:
        bm = _round_up(-(-B // 2), 8)
    return bm


def mlp_kernel(x_ref, w1_ref, b1_ref, w2_ref, b2_ref, o_ref):
    # In-kernel f32 -> bf16 cast (saves a wrapper-side HBM pass over x).
    x_bf = x_ref[...].astype(jnp.bfloat16)
    # First linear (bf16 inputs, f32 accumulation on the MXU) + bias + ReLU.
    h = jnp.dot(x_bf, w1_ref[...], preferred_element_type=jnp.float32)
    h = jnp.maximum(h + b1_ref[...], 0.0)                 # (bm, 512) + (1, 512)
    # Second linear: cast activations back to bf16 to stay on the fast MXU path.
    o = jnp.dot(h.astype(jnp.bfloat16), w2_ref[...],
                preferred_element_type=jnp.float32)
    o_ref[...] = (o + b2_ref[...]).astype(o_ref.dtype)    # (bm, 128) + (1, 128)


@functools.partial(jax.jit, static_argnames=("block_m",))
def simple_model_forward(x, w1_bf, b1, w2_bf, b2_p, *, block_m=512):
    """x: (B, 1024) f32; prepared params from prepare_params()."""
    B = x.shape[0]
    bm = _choose_bm(B, block_m)
    B_pad = _round_up(B, bm)

    # Pad the batch only when actually needed (no unconditional full-array HBM pass).
    if B_pad != B:
        x = jnp.pad(x, ((0, B_pad - B), (0, 0)))

    grid = (B_pad // bm,)

    cost = pl.CostEstimate(
        flops=2 * B_pad * (IN_F * HID_F + HID_F * OUT_PAD),
        transcendentals=0,
        bytes_accessed=(B_pad * IN_F * 4          # x read (f32, cast in-kernel)
                        + IN_F * HID_F * 2        # W1 (bf16, VMEM-resident)
                        + HID_F * 4               # b1 (f32)
                        + HID_F * OUT_PAD * 2     # W2 padded (bf16)
                        + OUT_PAD * 4             # b2 padded (f32)
                        + B_pad * OUT_PAD * 4),   # out (f32)
    )

    out_padded = pl.pallas_call(
        mlp_kernel,
        out_shape=jax.ShapeDtypeStruct((B_pad, OUT_PAD), jnp.float32),
        grid_spec=pltpu.PrefetchScalarGridSpec(
            num_scalar_prefetch=0,
            grid=grid,
            in_specs=[
                pl.BlockSpec((bm, IN_F), lambda i: (i, 0)),        # x tile (f32)
                pl.BlockSpec((IN_F, HID_F), lambda i: (0, 0)),     # W1 bf16 (resident)
                pl.BlockSpec((1, HID_F), lambda i: (0, 0)),        # b1 (f32)
                pl.BlockSpec((HID_F, OUT_PAD), lambda i: (0, 0)),  # W2 padded (resident)
                pl.BlockSpec((1, OUT_PAD), lambda i: (0, 0)),      # b2 padded (f32)
            ],
            out_specs=pl.BlockSpec((bm, OUT_PAD), lambda i: (i, 0)),
        ),
        compiler_params=pltpu.CompilerParams(
            dimension_semantics=("parallel",),
            # ~11 MiB of double-buffered VMEM at bm=1024; default scoped VMEM suffices
            # on all generations.  Set vmem_limit_bytes only if block_m is pushed >1024.
        ),
        cost_estimate=cost,
    )(x, w1_bf, b1, w2_bf, b2_p)

    # Slice back to the logical (B, 10) output.
    return out_padded[:B, :OUT_F]


def prepare_params(w1, b1, w2, b2):
    """One-time parameter prep (do this at load time, NOT per forward call):
    W1 -> bf16, W2/b2 zero-padded from 10 to 128 output lanes (bf16 / f32)."""
    w1_bf = w1.astype(jnp.bfloat16)
    w2_bf = jnp.pad(w2, ((0, 0), (0, OUT_PAD - OUT_F))).astype(jnp.bfloat16)
    b2_p = jnp.pad(b2, ((0, 0), (0, OUT_PAD - OUT_F)))
    return w1_bf, b1, w2_bf, b2_p


def init_params(key):
    """Deterministic init mimicking nn.Linear's U(-1/sqrt(fan_in), 1/sqrt(fan_in))."""
    k1, k2, k3, k4 = jax.random.split(key, 4)
    bound1 = 1.0 / (IN_F ** 0.5)
    bound2 = 1.0 / (HID_F ** 0.5)
    # Stored as (in_features, out_features) == PyTorch weight transposed.
    w1 = jax.random.uniform(k1, (IN_F, HID_F), jnp.float32, -bound1, bound1)
    b1 = jax.random.uniform(k2, (1, HID_F), jnp.float32, -bound1, bound1)
    w2 = jax.random.uniform(k3, (HID_F, OUT_F), jnp.float32, -bound2, bound2)
    b2 = jax.random.uniform(k4, (1, OUT_F), jnp.float32, -bound2, bound2)
    return w1, b1, w2, b2


if __name__ == "__main__":
    key = jax.random.PRNGKey(0)
    kx, kp = jax.random.split(key)

    B = 128  # small test batch; feature dims (1024 -> 512 -> 10) fixed by the module
    x = jax.random.normal(kx, (B, IN_F), dtype=jnp.float32)
    w1, b1, w2, b2 = init_params(kp)

    # One-time weight cast/pad (kept out of the per-call forward path).
    params = jax.block_until_ready(prepare_params(w1, b1, w2, b2))

    # With the default block_m=512 and B=128, the tile is auto-halved to 64 so the
    # parallel batch axis has 2 grid steps (exercises both TCs on v7x), with no padding.
    out = simple_model_forward(x, *params)
    out = jax.block_until_ready(out)

    # Reference check in plain JAX (same math as the PyTorch forward, f32).
    # Loose tolerance because the kernel uses bf16 weights/activations w/ f32 accumulation.
    ref = jnp.maximum(x @ w1 + b1, 0.0) @ w2 + b2
    assert out.shape == (B, OUT_F)
    assert jnp.allclose(out, ref, atol=5e-2, rtol=5e-2), (
        float(jnp.max(jnp.abs(out - ref))))

    print("KERNEL_OK")
</pallas_src>

<mosaic_0001>
module attributes {stable_mosaic.version = 11 : i64} {
  func.func @mlp_kernel(%arg0: i32, %arg1: memref<64x1024xf32, #tpu.memory_space<vmem>>, %arg2: memref<1024x512xbf16, #tpu.memory_space<vmem>>, %arg3: memref<1x512xf32, #tpu.memory_space<vmem>>, %arg4: memref<512x128xbf16, #tpu.memory_space<vmem>>, %arg5: memref<1x128xf32, #tpu.memory_space<vmem>>, %arg6: memref<64x128xf32, #tpu.memory_space<vmem>>) attributes {dimension_semantics = [#tpu.dimension_semantics<parallel>], iteration_bounds = array<i64: 2>, scalar_prefetch = 0 : i64, scratch_operands = 0 : i64, tpu.core_type = #tpu.core_type<tc>, window_params = [{transform_indices = @transform_0, window_bounds = array<i64: 64, 1024>}, {pipeline_mode = #tpu.pipeline_mode<synchronous>, transform_indices = @transform_1, window_bounds = array<i64: 1024, 512>}, {pipeline_mode = #tpu.pipeline_mode<synchronous>, transform_indices = @transform_2, window_bounds = array<i64: 1, 512>}, {pipeline_mode = #tpu.pipeline_mode<synchronous>, transform_indices = @transform_3, window_bounds = array<i64: 512, 128>}, {pipeline_mode = #tpu.pipeline_mode<synchronous>, transform_indices = @transform_4, window_bounds = array<i64: 1, 128>}, {transform_indices = @transform_5, window_bounds = array<i64: 64, 128>}]} {
    %c0 = arith.constant 0 : index
    %c0_0 = arith.constant 0 : index
    %0 = vector.load %arg1[%c0, %c0_0] : memref<64x1024xf32, #tpu.memory_space<vmem>>, vector<64x1024xf32>
    %1 = arith.truncf %0 : vector<64x1024xf32> to vector<64x1024xbf16>
    %c0_1 = arith.constant 0 : index
    %c0_2 = arith.constant 0 : index
    %2 = vector.load %arg2[%c0_1, %c0_2] : memref<1024x512xbf16, #tpu.memory_space<vmem>>, vector<1024x512xbf16>
    %cst = arith.constant dense<0.000000e+00> : vector<64x512xf32>
    %3 = tpu.matmul %1, %2, %cst {dimension_numbers = #tpu.dot_dimension_numbers<[1], [0], [0], [1], [0, 0, 1, 1], [], []>} : vector<64x1024xbf16>, vector<1024x512xbf16>, vector<64x512xf32> -> vector<64x512xf32>
    %c0_3 = arith.constant 0 : index
    %c0_4 = arith.constant 0 : index
    %4 = vector.load %arg3[%c0_3, %c0_4] : memref<1x512xf32, #tpu.memory_space<vmem>>, vector<1x512xf32>
    %5 = vector.broadcast %4 : vector<1x512xf32> to vector<64x512xf32>
    %6 = arith.addf %3, %5 : vector<64x512xf32>
    %cst_5 = arith.constant 0.000000e+00 : f32
    %7 = vector.broadcast %cst_5 : f32 to vector<64x512xf32>
    %8 = arith.maximumf %6, %7 : vector<64x512xf32>
    %9 = arith.truncf %8 : vector<64x512xf32> to vector<64x512xbf16>
    %c0_6 = arith.constant 0 : index
    %c0_7 = arith.constant 0 : index
    %10 = vector.load %arg4[%c0_6, %c0_7] : memref<512x128xbf16, #tpu.memory_space<vmem>>, vector<512x128xbf16>
    %cst_8 = arith.constant dense<0.000000e+00> : vector<64x128xf32>
    %11 = tpu.matmul %9, %10, %cst_8 {dimension_numbers = #tpu.dot_dimension_numbers<[1], [0], [0], [1], [0, 0, 1, 1], [], []>} : vector<64x512xbf16>, vector<512x128xbf16>, vector<64x128xf32> -> vector<64x128xf32>
    %c0_9 = arith.constant 0 : index
    %c0_10 = arith.constant 0 : index
    %12 = vector.load %arg5[%c0_9, %c0_10] : memref<1x128xf32, #tpu.memory_space<vmem>>, vector<1x128xf32>
    %13 = vector.broadcast %12 : vector<1x128xf32> to vector<64x128xf32>
    %14 = arith.addf %11, %13 : vector<64x128xf32>
    %c0_11 = arith.constant 0 : index
    %c0_12 = arith.constant 0 : index
    %15 = vector.load %arg6[%c0_11, %c0_12] : memref<64x128xf32, #tpu.memory_space<vmem>>, vector<64x128xf32>
    tpu.vector_store %arg6[%c0_11, %c0_12], %14 {strides = array<i32>} : memref<64x128xf32, #tpu.memory_space<vmem>>, vector<64x128xf32>,
    return
  }
  func.func @transform_0(%arg0: i32) -> (i32, i32) {
    %c0_i32 = arith.constant 0 : i32
    %c0_i32_0 = arith.constant 0 : i32
    return %arg0, %c0_i32 : i32, i32
  }
  func.func @transform_1(%arg0: i32) -> (i32, i32) {
    %c0_i32 = arith.constant 0 : i32
    %c0_i32_0 = arith.constant 0 : i32
    %c0_i32_1 = arith.constant 0 : i32
    return %c0_i32, %c0_i32_0 : i32, i32
  }
  func.func @transform_2(%arg0: i32) -> (i32, i32) {
    %c0_i32 = arith.constant 0 : i32
    %c0_i32_0 = arith.constant 0 : i32
    %c0_i32_1 = arith.constant 0 : i32
    return %c0_i32, %c0_i32_0 : i32, i32
  }
  func.func @transform_3(%arg0: i32) -> (i32, i32) {
    %c0_i32 = arith.constant 0 : i32
    %c0_i32_0 = arith.constant 0 : i32
    %c0_i32_1 = arith.constant 0 : i32
    return %c0_i32, %c0_i32_0 : i32, i32
  }
  func.func @transform_4(%arg0: i32) -> (i32, i32) {
    %c0_i32 = arith.constant 0 : i32
    %c0_i32_0 = arith.constant 0 : i32
    %c0_i32_1 = arith.constant 0 : i32
    return %c0_i32, %c0_i32_0 : i32, i32
  }
  func.func @transform_5(%arg0: i32) -> (i32, i32) {
    %c0_i32 = arith.constant 0 : i32
    %c0_i32_0 = arith.constant 0 : i32
    return %arg0, %c0_i32 : i32, i32
  }
}

</mosaic_0001>

<llo_original>
// kernel: simple_model_forward.1
$region0: #{simple_model_forward.1}
  #allocation0 [shape = 'u32[]', space=smem, size = 0x4, offset = 0x4, fixed_abs, tag = 'smem constant byte address 0x4 - core index']
  #allocation1 [shape = 'u32[72,128]{1,0:T(1,128)}', space=vmem, size = 0x9000, scoped, tag = 'internal scratch']
  %s0 = inlined_call_operand.hbm [shape: f32[128,1024], index: 0, kind: input, shape index: {}]
  %s1 = inlined_call_operand.hbm [shape: bf16[1024,512], index: 1, kind: input, shape index: {}]
  %s2 = inlined_call_operand.hbm [shape: f32[1,512], index: 2, kind: input, shape index: {}]
  %s3 = inlined_call_operand.hbm [shape: bf16[512,128], index: 3, kind: input, shape index: {}]
  %s4 = inlined_call_operand.vmem [shape: f32[1,128], index: 4, kind: input, shape index: {}]
  %s5 = inlined_call_operand.vmem [shape: f32[128,128], index: 5, kind: output, shape index: {}]
  %s6 = sld [smem:[#allocation0]]
  $region69: #{simple_model_forward.1} parent=0
    _
  %s8 = ssub.s32 1, %s6
  %s9 = scalar_select 0, %s8, %s6
  $region1: #{simple_model_forward.1} parent=0
    #allocation2 [shape = 'u8[524288]{0}', space=vmem, size = 0x80000, scoped, tag = 'input window, operand 0']
    #allocation3 [shape = 's32[2]{0}', space=sflag, size = 0x8, scoped, tag = 'scoped memory for simple_model_forward.1']
    #allocation4 [shape = 'u8[1048576]{0}', space=vmem, size = 0x100000, scoped, tag = 'input window, operand 1, single buffered']
    #allocation5 [shape = 's32[1]{0}', space=sflag, size = 0x4, scoped, tag = 'scoped memory for simple_model_forward.1']
    #allocation6 [shape = 'u8[2048]{0}', space=vmem, size = 0x800, scoped, tag = 'input window, operand 2, single buffered']
    #allocation7 [shape = 'u8[131072]{0}', space=vmem, size = 0x20000, scoped, tag = 'input window, operand 3, single buffered']
    #allocation8 [shape = 's32[1]{0}', space=sflag, size = 0x4, scoped, tag = 'scoped memory for simple_model_forward.1']
    %10 = vsyncpa [#allocation3], 0
    %s11 = scalar_lea.sflag [#allocation3], 1
    %12 = vsyncpa %s11, 0
    %13 = vsyncpa [#allocation5], 0
    %14 = vsyncpa [#allocation8], 0
    loop: start=0, step=1, limit=4
    $region2: #{simple_model_forward.1} parent=1 // loop_pre_header
      _
    $region3: #{simple_model_forward.1} parent=1 // loop_header
      %s16 = sphi 0, %s20
      %p17 = scmp.ge.s32.totalorder %s16, 4
      %s26 = sphi 0, %s28
      %s29 = sphi 0, %s26
      %s30 = sphi 0, %s29
      %s46 = sphi 0, %s30
      %s50 = sphi 0, %s50
      %s52 = sphi 0, %s50
      %s53 = sphi 0, %s52
      %s67 = sphi 0, %s53
      %s71 = sphi 0, %s71
      %s73 = sphi 0, %s71
      %s74 = sphi 0, %s73
      %s88 = sphi 0, %s74
      %s92 = sphi 0, %s92
      %s94 = sphi 0, %s92
      %s95 = sphi 0, %s94
      %s109 = sphi 0, %s95
      %s113 = sphi 0, %s113
      %s115 = sphi 0, %s113
      %s116 = sphi 0, %s115
      %s130 = sphi 0, %s116
      %s136 = sphi 0, %s138
      %s139 = sphi 0, %s136
      %s140 = sphi 0, %s139
      %s156 = sphi 0, %s140
    $region4: #{simple_model_forward.1} parent=1 // loop_header_branch
      %19 = sbr.rel (%p17) target = $region8
    $region5: #{simple_model_forward.1} parent=1 // loop_body
      %s21 = ssub.s32 %s16, 1
      %s22 = ssub.s32 %s16, 2
      %s23 = sadd.s32 %s16, 1
      %s24 = ssub.s32 %s16, %s23
      %p25 = scmp.eq.s32.totalorder %s24, 0
      %s27 = sadd.s32 %s26, 1
      %s28 = scalar_select %p25, %s26, %s27
      %p31 = pneg %p25
      %p32 = scmp.eq.s32.totalorder %s16, 1
      %p33 = por %p31, %p32
      %p34 = scmp.ne.s32.totalorder %s26, %s29
      %p35 = scmp.eq.s32.totalorder %s16, 0
      %p36 = por %p34, %p35
      %p37 = scmp.ne.s32.totalorder %s26, %s29
      %p38 = scmp.eq.s32.totalorder %s21, 1
      %p39 = por %p37, %p38
      %p40 = scmp.ne.s32.totalorder %s29, %s30
      %p41 = scmp.eq.s32.totalorder %s21, 0
      %p42 = por %p40, %p41
      %p43 = scmp.ne.s32.totalorder %s29, %s30
      %p44 = scmp.eq.s32.totalorder %s22, 1
      %p45 = por %p43, %p44
      %p47 = scmp.ne.s32.totalorder %s30, %s46
      %p48 = scmp.eq.s32.totalorder %s22, 0
      %p49 = por %p47, %p48
      %s51 = sadd.s32 %s50, 1
      %p54 = scmp.eq.s32.totalorder %s16, 1
      %p55 = scmp.ne.s32.totalorder %s50, %s52
      %p56 = scmp.eq.s32.totalorder %s16, 0
      %p57 = por %p55, %p56
      %p58 = scmp.ne.s32.totalorder %s50, %s52
      %p59 = scmp.eq.s32.totalorder %s21, 1
      %p60 = por %p58, %p59
      %p61 = scmp.ne.s32.totalorder %s52, %s53
      %p62 = scmp.eq.s32.totalorder %s21, 0
      %p63 = por %p61, %p62
      %p64 = scmp.ne.s32.totalorder %s52, %s53
      %p65 = scmp.eq.s32.totalorder %s22, 1
      %p66 = por %p64, %p65
      %p68 = scmp.ne.s32.totalorder %s53, %s67
      %p69 = scmp.eq.s32.totalorder %s22, 0
      %p70 = por %p68, %p69
      %s72 = sadd.s32 %s71, 1
      %p75 = scmp.eq.s32.totalorder %s16, 1
      %p76 = scmp.ne.s32.totalorder %s71, %s73
      %p77 = scmp.eq.s32.totalorder %s16, 0
      %p78 = por %p76, %p77
      %p79 = scmp.ne.s32.totalorder %s71, %s73
      %p80 = scmp.eq.s32.totalorder %s21, 1
      %p81 = por %p79, %p80
      %p82 = scmp.ne.s32.totalorder %s73, %s74
      %p83 = scmp.eq.s32.totalorder %s21, 0
      %p84 = por %p82, %p83
      %p85 = scmp.ne.s32.totalorder %s73, %s74
      %p86 = scmp.eq.s32.totalorder %s22, 1
      %p87 = por %p85, %p86
      %p89 = scmp.ne.s32.totalorder %s74, %s88
      %p90 = scmp.eq.s32.totalorder %s22, 0
      %p91 = por %p89, %p90
      %s93 = sadd.s32 %s92, 1
      %p96 = scmp.eq.s32.totalorder %s16, 1
      %p97 = scmp.ne.s32.totalorder %s92, %s94
      %p98 = scmp.eq.s32.totalorder %s16, 0
      %p99 = por %p97, %p98
      %p100 = scmp.ne.s32.totalorder %s92, %s94
      %p101 = scmp.eq.s32.totalorder %s21, 1
      %p102 = por %p100, %p101
      %p103 = scmp.ne.s32.totalorder %s94, %s95
      %p104 = scmp.eq.s32.totalorder %s21, 0
      %p105 = por %p103, %p104
      %p106 = scmp.ne.s32.totalorder %s94, %s95
      %p107 = scmp.eq.s32.totalorder %s22, 1
      %p108 = por %p106, %p107
      %p110 = scmp.ne.s32.totalorder %s95, %s109
      %p111 = scmp.eq.s32.totalorder %s22, 0
      %p112 = por %p110, %p111
      %s114 = sadd.s32 %s113, 1
      %p117 = scmp.eq.s32.totalorder %s16, 1
      %p118 = scmp.ne.s32.totalorder %s113, %s115
      %p119 = scmp.eq.s32.totalorder %s16, 0
      %p120 = por %p118, %p119
      %p121 = scmp.ne.s32.totalorder %s113, %s115
      %p122 = scmp.eq.s32.totalorder %s21, 1
      %p123 = por %p121, %p122
      %p124 = scmp.ne.s32.totalorder %s115, %s116
      %p125 = scmp.eq.s32.totalorder %s21, 0
      %p126 = por %p124, %p125
      %p127 = scmp.ne.s32.totalorder %s115, %s116
      %p128 = scmp.eq.s32.totalorder %s22, 1
      %p129 = por %p127, %p128
      %p131 = scmp.ne.s32.totalorder %s116, %s130
      %p132 = scmp.eq.s32.totalorder %s22, 0
      %p133 = por %p131, %p132
      %s134 = ssub.s32 %s16, %s23
      %p135 = scmp.eq.s32.totalorder %s134, 0
      %s137 = sadd.s32 %s136, 1
      %s138 = scalar_select %p135, %s136, %s137
      %p141 = pneg %p135
      %p142 = scmp.eq.s32.totalorder %s16, 1
      %p143 = por %p141, %p142
      %p144 = scmp.ne.s32.totalorder %s136, %s139
      %p145 = scmp.eq.s32.totalorder %s16, 0
      %p146 = por %p144, %p145
      %p147 = scmp.ne.s32.totalorder %s136, %s139
      %p148 = scmp.eq.s32.totalorder %s21, 1
      %p149 = por %p147, %p148
      %p150 = scmp.ne.s32.totalorder %s139, %s140
      %p151 = scmp.eq.s32.totalorder %s21, 0
      %p152 = por %p150, %p151
      %p153 = scmp.ne.s32.totalorder %s139, %s140
      %p154 = scmp.eq.s32.totalorder %s22, 1
      %p155 = por %p153, %p154
      %p157 = scmp.ne.s32.totalorder %s140, %s156
      %p158 = scmp.eq.s32.totalorder %s22, 0
      %p159 = por %p157, %p158
      %p160 = scmp.le.s32.totalorder 1, %s16
      %p161 = scmp.lt.s32.totalorder %s16, 3
      %p162 = pnand %p160, %p161
      %p163 = pneg %p162
      // Predicated region
      $region9: #{simple_model_forward.1} parent=5 // pred_check
        _
      $region10: #{simple_model_forward.1} parent=5 // pred_check_branch
        %165 = sbr.rel (%p162) target = $region12
      $region11: #{simple_model_forward.1} parent=5 // pred_region
        %s166 = ssub.s32 %s16, 1
        // Predicated region
        $region13: #{simple_model_forward.1} parent=11 // pred_check
          %p167 = pneg %p63
        $region14: #{simple_model_forward.1} parent=11 // pred_check_branch
          %169 = sbr.rel (%p167) target = $region16
        $region15: #{simple_model_forward.1} parent=11 // pred_region
          %171 = vsyncadd [#allocation5], 0
          %s172 = sshll.u32 %s1, 4
          %s173 = int_to_ptr.hbm [resolvable:$true] %s172
          %s174 = sshll.u32 [#allocation4], 4
          %s175 = int_to_ptr.vmem [resolvable:$true] %s174
          %180 = dma.hbm_to_vmem [thread:$0]  %s173, 32768, %s175, [#allocation5], 256, 256, 16
        $region16: #{simple_model_forward.1} parent=11 // pred_fallthru
          _
        // Predicated region
        $region17: #{simple_model_forward.1} parent=11 // pred_check
          %p181 = pneg %p84
        $region18: #{simple_model_forward.1} parent=11 // pred_check_branch
          %183 = sbr.rel (%p181) target = $region20
        $region19: #{simple_model_forward.1} parent=11 // pred_region
          %185 = vsyncadd [#allocation5], 0
          %s187 = sshll.u32 %s2, 4
          %s188 = int_to_ptr.hbm [resolvable:$true] %s187
          %s189 = sshll.u32 [#allocation6], 4
          %s190 = int_to_ptr.vmem [resolvable:$true] %s189
          %192 = dma.hbm_to_vmem [thread:$0]  %s188, 64, %s190, [#allocation5]
        $region20: #{simple_model_forward.1} parent=11 // pred_fallthru
          _
        // Predicated region
        $region21: #{simple_model_forward.1} parent=11 // pred_check
          %p193 = pneg %p105
        $region22: #{simple_model_forward.1} parent=11 // pred_check_branch
          %195 = sbr.rel (%p193) target = $region24
        $region23: #{simple_model_forward.1} parent=11 // pred_region
          %197 = vsyncadd [#allocation8], 0
          %s198 = sshll.u32 %s3, 4
          %s199 = int_to_ptr.hbm [resolvable:$true] %s198
          %s200 = sshll.u32 [#allocation7], 4
          %s201 = int_to_ptr.vmem [resolvable:$true] %s200
          %206 = dma.hbm_to_vmem [thread:$0]  %s199, 4096, %s201, [#allocation8], 64, 64, 4
        $region24: #{simple_model_forward.1} parent=11 // pred_fallthru
          _
        // Predicated region
        $region25: #{simple_model_forward.1} parent=11 // pred_check
          %p207 = pneg %p126
        $region26: #{simple_model_forward.1} parent=11 // pred_check_branch
          %209 = sbr.rel (%p207) target = $region28
        $region27: #{simple_model_forward.1} parent=11 // pred_region
          _
        $region28: #{simple_model_forward.1} parent=11 // pred_fallthru
          _
      $region12: #{simple_model_forward.1} parent=5 // pred_fallthru
        _
      %p210 = scmp.lt.s32.totalorder %s16, 2
      // Predicated region
      $region29: #{simple_model_forward.1} parent=5 // pred_check
        %p211 = pneg %p210
      $region30: #{simple_model_forward.1} parent=5 // pred_check_branch
        %213 = sbr.rel (%p211) target = $region32
      $region31: #{simple_model_forward.1} parent=5 // pred_region
        // Predicated region
        $region33: #{simple_model_forward.1} parent=31 // pred_check
          %p214 = pneg %p36
        $region34: #{simple_model_forward.1} parent=31 // pred_check_branch
          %216 = sbr.rel (%p214) target = $region36
        $region35: #{simple_model_forward.1} parent=31 // pred_region
          %s217 = sand.u32 %s26, 1
          %s218 = scalar_lea.sflag [#allocation3], %s217
          %s219 = sand.u32 %s26, 1
          %s220 = smul.addr %s219, 512
          %s221 = scalar_lea.vmem [#allocation2], %s220
          %s222 = smul.u32 8, %s16
          %224 = vsyncadd %s218, 0
          %s225 = smul.addr %s222, 8
          %s226 = smul.addr %s225, 8
          %s227 = scalar_lea.hbm %s0, %s226
          %s228 = sshll.u32 %s227, 4
          %s229 = int_to_ptr.hbm [resolvable:$true] %s228
          %s230 = sshll.u32 %s221, 4
          %s231 = int_to_ptr.vmem [resolvable:$true] %s230
          %236 = dma.hbm_to_vmem [thread:$0]  %s229, 8192, %s231, %s218, 1024, 1024, 64
        $region36: #{simple_model_forward.1} parent=31 // pred_fallthru
          _
      $region32: #{simple_model_forward.1} parent=5 // pred_fallthru
        _
      %p237 = scmp.le.s32.totalorder 1, %s16
      %p238 = scmp.lt.s32.totalorder %s16, 3
      %p239 = pnand %p237, %p238
      %p240 = pneg %p239
      // Predicated region
      $region37: #{simple_model_forward.1} parent=5 // pred_check
        _
      $region38: #{simple_model_forward.1} parent=5 // pred_check_branch
        %242 = sbr.rel (%p239) target = $region40
      $region39: #{simple_model_forward.1} parent=5 // pred_region
        %s243 = ssub.s32 %s16, 1
        %s244 = sand.u32 %s29, 1
        %s245 = scalar_lea.sflag [#allocation3], %s244
        %s246 = sand.u32 %s29, 1
        %s247 = smul.addr %s246, 512
        %s248 = scalar_lea.vmem [#allocation2], %s247
        // Predicated region
        $region41: #{simple_model_forward.1} parent=39 // pred_check
          %p249 = pneg %p42
        $region42: #{simple_model_forward.1} parent=39 // pred_check_branch
          %251 = sbr.rel (%p249) target = $region44
        $region43: #{simple_model_forward.1} parent=39 // pred_region
          %253 = dma.done %s245, 8192
        $region44: #{simple_model_forward.1} parent=39 // pred_fallthru
          _
        // Predicated region
        $region45: #{simple_model_forward.1} parent=39 // pred_check
          %p254 = pneg %p63
        $region46: #{simple_model_forward.1} parent=39 // pred_check_branch
          %256 = sbr.rel (%p254) target = $region48
        $region47: #{simple_model_forward.1} parent=39 // pred_region
          %258 = dma.done [#allocation5], 32768
        $region48: #{simple_model_forward.1} parent=39 // pred_fallthru
          _
        // Predicated region
        $region49: #{simple_model_forward.1} parent=39 // pred_check
          %p259 = pneg %p84
        $region50: #{simple_model_forward.1} parent=39 // pred_check_branch
          %261 = sbr.rel (%p259) target = $region52
        $region51: #{simple_model_forward.1} parent=39 // pred_region
          %263 = dma.done [#allocation5], 64
        $region52: #{simple_model_forward.1} parent=39 // pred_fallthru
          _
        // Predicated region
        $region53: #{simple_model_forward.1} parent=39 // pred_check
          %p264 = pneg %p105
        $region54: #{simple_model_forward.1} parent=39 // pred_check_branch
          %266 = sbr.rel (%p264) target = $region56
        $region55: #{simple_model_forward.1} parent=39 // pred_region
          %268 = dma.done [#allocation8], 4096
        $region56: #{simple_model_forward.1} parent=39 // pred_fallthru
          _
        %s269 = sand.u32 %s29, 1
        %s270 = scalar_lea.sflag [#allocation3], %s269
        %s271 = sand.u32 %s29, 1
        %s272 = smul.addr %s271, 512
        %s273 = scalar_lea.vmem [#allocation2], %s272
        %p274 = pneg %p42
        %p275 = pneg %p39
        %p276 = pneg %p63
        %p277 = pneg %p60
        %p278 = pneg %p84
        %p279 = pneg %p81
        %p280 = pneg %p105
        %p281 = pneg %p102
        %p282 = pneg %p126
        %p283 = pneg %p123
        %p284 = pneg %p152
        %p285 = pneg %p149
        %s286 = smul.u32 8, %s21
        %p287 = scmp.lt.s32.totalorder %s286, 15
        %s288 = scalar_select %p287, %s286, 15
        %s289 = smul.addr %s288, 8
        %s290 = scalar_lea.vmem %s5, %s289
        %s291 = smul.u32 8, %s21
        %s292 = smul.u32 8, %s21
        %p293 = scmp.lt.s32.totalorder %s292, 15
        %s294 = scalar_select %p293, %s292, 15
        %s295 = smul.addr %s294, 8
        %s296 = scalar_lea.vmem %s5, %s295
        %s297 = smul.u32 8, %s21
        %v298 = vld [vmem:[%s248] sm:$0xff]
        %v299 = vld [vmem:[%s248 + $0x8] sm:$0xff]
        %v300 = vld [vmem:[%s248 + $0x10] sm:$0xff]
        %v301 = vld [vmem:[%s248 + $0x18] sm:$0xff]
        %v302 = vld [vmem:[%s248 + $0x20] sm:$0xff]
        %v303 = vld [vmem:[%s248 + $0x28] sm:$0xff]
        %v304 = vld [vmem:[%s248 + $0x30] sm:$0xff]
        %v305 = vld [vmem:[%s248 + $0x38] sm:$0xff]
        %v306 = vld [vmem:[%s248 + $0x40] sm:$0xff]
        %v307 = vld [vmem:[%s248 + $0x48] sm:$0xff]
        %v308 = vld [vmem:[%s248 + $0x50] sm:$0xff]
        %v309 = vld [vmem:[%s248 + $0x58] sm:$0xff]
        %v310 = vld [vmem:[%s248 + $0x60] sm:$0xff]
        %v311 = vld [vmem:[%s248 + $0x68] sm:$0xff]
        %v312 = vld [vmem:[%s248 + $0x70] sm:$0xff]
        %v313 = vld [vmem:[%s248 + $0x78] sm:$0xff]
        %v314 = vld [vmem:[%s248 + $0x80] sm:$0xff]
        %v315 = vld [vmem:[%s248 + $0x88] sm:$0xff]
        %v316 = vld [vmem:[%s248 + $0x90] sm:$0xff]
        %v317 = vld [vmem:[%s248 + $0x98] sm:$0xff]
        %v318 = vld [vmem:[%s248 + $0xa0] sm:$0xff]
        %v319 = vld [vmem:[%s248 + $0xa8] sm:$0xff]
        %v320 = vld [vmem:[%s248 + $0xb0] sm:$0xff]
        %v321 = vld [vmem:[%s248 + $0xb8] sm:$0xff]
        %v322 = vld [vmem:[%s248 + $0xc0] sm:$0xff]
        %v323 = vld [vmem:[%s248 + $0xc8] sm:$0xff]
        %v324 = vld [vmem:[%s248 + $0xd0] sm:$0xff]
        %v325 = vld [vmem:[%s248 + $0xd8] sm:$0xff]
        %v326 = vld [vmem:[%s248 + $0xe0] sm:$0xff]
        %v327 = vld [vmem:[%s248 + $0xe8] sm:$0xff]
        %v328 = vld [vmem:[%s248 + $0xf0] sm:$0xff]
        %v329 = vld [vmem:[%s248 + $0xf8] sm:$0xff]
        %v330 = vld [vmem:[%s248 + $0x100] sm:$0xff]
        %v331 = vld [vmem:[%s248 + $0x108] sm:$0xff]
        %v332 = vld [vmem:[%s248 + $0x110] sm:$0xff]
        %v333 = vld [vmem:[%s248 + $0x118] sm:$0xff]
        %v334 = vld [vmem:[%s248 + $0x120] sm:$0xff]
        %v335 = vld [vmem:[%s248 + $0x128] sm:$0xff]
        %v336 = vld [vmem:[%s248 + $0x130] sm:$0xff]
        %v337 = vld [vmem:[%s248 + $0x138] sm:$0xff]
        %v338 = vld [vmem:[%s248 + $0x140] sm:$0xff]
        %v339 = vld [vmem:[%s248 + $0x148] sm:$0xff]
        %v340 = vld [vmem:[%s248 + $0x150] sm:$0xff]
        %v341 = vld [vmem:[%s248 + $0x158] sm:$0xff]
        %v342 = vld [vmem:[%s248 + $0x160] sm:$0xff]
        %v343 = vld [vmem:[%s248 + $0x168] sm:$0xff]
        %v344 = vld [vmem:[%s248 + $0x170] sm:$0xff]
        %v345 = vld [vmem:[%s248 + $0x178] sm:$0xff]
        %v346 = vld [vmem:[%s248 + $0x180] sm:$0xff]
        %v347 = vld [vmem:[%s248 + $0x188] sm:$0xff]
        %v348 = vld [vmem:[%s248 + $0x190] sm:$0xff]
        %v349 = vld [vmem:[%s248 + $0x198] sm:$0xff]
        %v350 = vld [vmem:[%s248 + $0x1a0] sm:$0xff]
        %v351 = vld [vmem:[%s248 + $0x1a8] sm:$0xff]
        %v352 = vld [vmem:[%s248 + $0x1b0] sm:$0xff]
        %v353 = vld [vmem:[%s248 + $0x1b8] sm:$0xff]
        %v354 = vld [vmem:[%s248 + $0x1c0] sm:$0xff]
        %v355 = vld [vmem:[%s248 + $0x1c8] sm:$0xff]
        %v356 = vld [vmem:[%s248 + $0x1d0] sm:$0xff]
        %v357 = vld [vmem:[%s248 + $0x1d8] sm:$0xff]
        %v358 = vld [vmem:[%s248 + $0x1e0] sm:$0xff]
        %v359 = vld [vmem:[%s248 + $0x1e8] sm:$0xff]
        %v360 = vld [vmem:[%s248 + $0x1f0] sm:$0xff]
        %v361 = vld [vmem:[%s248 + $0x1f8] sm:$0xff]
        %v362 = vpack.c.bf16 %v306, %v298
        %v363 = vpack.c.bf16 %v307, %v299
        %v364 = vpack.c.bf16 %v308, %v300
        %v365 = vpack.c.bf16 %v309, %v301
        %v366 = vpack.c.bf16 %v310, %v302
        %v367 = vpack.c.bf16 %v311, %v303
        %v368 = vpack.c.bf16 %v312, %v304
        %v369 = vpack.c.bf16 %v313, %v305
        %v370 = vpack.c.bf16 %v322, %v314
        %v371 = vpack.c.bf16 %v323, %v315
        %v372 = vpack.c.bf16 %v324, %v316
        %v373 = vpack.c.bf16 %v325, %v317
        %v374 = vpack.c.bf16 %v326, %v318
        %v375 = vpack.c.bf16 %v327, %v319
        %v376 = vpack.c.bf16 %v328, %v320
        %v377 = vpack.c.bf16 %v329, %v321
        %v378 = vpack.c.bf16 %v338, %v330
        %v379 = vpack.c.bf16 %v339, %v331
        %v380 = vpack.c.bf16 %v340, %v332
        %v381 = vpack.c.bf16 %v341, %v333
        %v382 = vpack.c.bf16 %v342, %v334
        %v383 = vpack.c.bf16 %v343, %v335
        %v384 = vpack.c.bf16 %v344, %v336
        %v385 = vpack.c.bf16 %v345, %v337
        %v386 = vpack.c.bf16 %v354, %v346
        %v387 = vpack.c.bf16 %v355, %v347
        %v388 = vpack.c.bf16 %v356, %v348
        %v389 = vpack.c.bf16 %v357, %v349
        %v390 = vpack.c.bf16 %v358, %v350
        %v391 = vpack.c.bf16 %v359, %v351
        %v392 = vpack.c.bf16 %v360, %v352
        %v393 = vpack.c.bf16 %v361, %v353
        %v394 = vld [vmem:[#allocation4] sm:$0xff]
        %v395 = vld [vmem:[#allocation4 + $0x8] sm:$0xff]
        %v396 = vld [vmem:[#allocation4 + $0x10] sm:$0xff]
        %v397 = vld [vmem:[#allocation4 + $0x18] sm:$0xff]
        %v398 = vld [vmem:[#allocation4 + $0x20] sm:$0xff]
        %v399 = vld [vmem:[#allocation4 + $0x28] sm:$0xff]
        %v400 = vld [vmem:[#allocation4 + $0x30] sm:$0xff]
        %v401 = vld [vmem:[#allocation4 + $0x38] sm:$0xff]
        %v402 = vld [vmem:[#allocation4 + $0x40] sm:$0xff]
        %v403 = vld [vmem:[#allocation4 + $0x48] sm:$0xff]
        %v404 = vld [vmem:[#allocation4 + $0x50] sm:$0xff]
        %v405 = vld [vmem:[#allocation4 + $0x58] sm:$0xff]
        %v406 = vld [vmem:[#allocation4 + $0x60] sm:$0xff]
        %v407 = vld [vmem:[#allocation4 + $0x68] sm:$0xff]
        %v408 = vld [vmem:[#allocation4 + $0x70] sm:$0xff]
        %v409 = vld [vmem:[#allocation4 + $0x78] sm:$0xff]
        %v410 = vld [vmem:[#allocation4 + $0x80] sm:$0xff]
        %v411 = vld [vmem:[#allocation4 + $0x88] sm:$0xff]
        %v412 = vld [vmem:[#allocation4 + $0x90] sm:$0xff]
        %v413 = vld [vmem:[#allocation4 + $0x98] sm:$0xff]
        %v414 = vld [vmem:[#allocation4 + $0xa0] sm:$0xff]
        %v415 = vld [vmem:[#allocation4 + $0xa8] sm:$0xff]
        %v416 = vld [vmem:[#allocation4 + $0xb0] sm:$0xff]
        %v417 = vld [vmem:[#allocation4 + $0xb8] sm:$0xff]
        %v418 = vld [vmem:[#allocation4 + $0xc0] sm:$0xff]
        %v419 = vld [vmem:[#allocation4 + $0xc8] sm:$0xff]
        %v420 = vld [vmem:[#allocation4 + $0xd0] sm:$0xff]
        %v421 = vld [vmem:[#allocation4 + $0xd8] sm:$0xff]
        %v422 = vld [vmem:[#allocation4 + $0xe0] sm:$0xff]
        %v423 = vld [vmem:[#allocation4 + $0xe8] sm:$0xff]
        %v424 = vld [vmem:[#allocation4 + $0xf0] sm:$0xff]
        %v425 = vld [vmem:[#allocation4 + $0xf8] sm:$0xff]
        %v426 = vld [vmem:[#allocation4 + $0x100] sm:$0xff]
        %v427 = vld [vmem:[#allocation4 + $0x108] sm:$0xff]
        %v428 = vld [vmem:[#allocation4 + $0x110] sm:$0xff]
        %v429 = vld [vmem:[#allocation4 + $0x118] sm:$0xff]
        %v430 = vld [vmem:[#allocation4 + $0x120] sm:$0xff]
        %v431 = vld [vmem:[#allocation4 + $0x128] sm:$0xff]
        %v432 = vld [vmem:[#allocation4 + $0x130] sm:$0xff]
        %v433 = vld [vmem:[#allocation4 + $0x138] sm:$0xff]
        %v434 = vld [vmem:[#allocation4 + $0x140] sm:$0xff]
        %v435 = vld [vmem:[#allocation4 + $0x148] sm:$0xff]
        %v436 = vld [vmem:[#allocation4 + $0x150] sm:$0xff]
        %v437 = vld [vmem:[#allocation4 + $0x158] sm:$0xff]
        %v438 = vld [vmem:[#allocation4 + $0x160] sm:$0xff]
        %v439 = vld [vmem:[#allocation4 + $0x168] sm:$0xff]
        %v440 = vld [vmem:[#allocation4 + $0x170] sm:$0xff]
        %v441 = vld [vmem:[#allocation4 + $0x178] sm:$0xff]
        %v442 = vld [vmem:[#allocation4 + $0x180] sm:$0xff]
        %v443 = vld [vmem:[#allocation4 + $0x188] sm:$0xff]
        %v444 = vld [vmem:[#allocation4 + $0x190] sm:$0xff]
        %v445 = vld [vmem:[#allocation4 + $0x198] sm:$0xff]
        %v446 = vld [vmem:[#allocation4 + $0x1a0] sm:$0xff]
        %v447 = vld [vmem:[#allocation4 + $0x1a8] sm:$0xff]
        %v448 = vld [vmem:[#allocation4 + $0x1b0] sm:$0xff]
        %v449 = vld [vmem:[#allocation4 + $0x1b8] sm:$0xff]
        %v450 = vld [vmem:[#allocation4 + $0x1c0] sm:$0xff]
        %v451 = vld [vmem:[#allocation4 + $0x1c8] sm:$0xff]
        %v452 = vld [vmem:[#allocation4 + $0x1d0] sm:$0xff]
        %v453 = vld [vmem:[#allocation4 + $0x1d8] sm:$0xff]
        %v454 = vld [vmem:[#allocation4 + $0x1e0] sm:$0xff]
        %v455 = vld [vmem:[#allocation4 + $0x1e8] sm:$0xff]
        %v456 = vld [vmem:[#allocation4 + $0x1f0] sm:$0xff]
        %v457 = vld [vmem:[#allocation4 + $0x1f8] sm:$0xff]
        %v458 = vld [vmem:[#allocation4 + $0x200] sm:$0xff]
        %v459 = vld [vmem:[#allocation4 + $0x208] sm:$0xff]
        %v460 = vld [vmem:[#allocation4 + $0x210] sm:$0xff]
        %v461 = vld [vmem:[#allocation4 + $0x218] sm:$0xff]
        %v462 = vld [vmem:[#allocation4 + $0x220] sm:$0xff]
        %v463 = vld [vmem:[#allocation4 + $0x228] sm:$0xff]
        %v464 = vld [vmem:[#allocation4 + $0x230] sm:$0xff]
        %v465 = vld [vmem:[#allocation4 + $0x238] sm:$0xff]
        %v466 = vld [vmem:[#allocation4 + $0x240] sm:$0xff]
        %v467 = vld [vmem:[#allocation4 + $0x248] sm:$0xff]
        %v468 = vld [vmem:[#allocation4 + $0x250] sm:$0xff]
        %v469 = vld [vmem:[#allocation4 + $0x258] sm:$0xff]
        %v470 = vld [vmem:[#allocation4 + $0x260] sm:$0xff]
        %v471 = vld [vmem:[#allocation4 + $0x268] sm:$0xff]
        %v472 = vld [vmem:[#allocation4 + $0x270] sm:$0xff]
        %v473 = vld [vmem:[#allocation4 + $0x278] sm:$0xff]
        %v474 = vld [vmem:[#allocation4 + $0x280] sm:$0xff]
        %v475 = vld [vmem:[#allocation4 + $0x288] sm:$0xff]
        %v476 = vld [vmem:[#allocation4 + $0x290] sm:$0xff]
        %v477 = vld [vmem:[#allocation4 + $0x298] sm:$0xff]
        %v478 = vld [vmem:[#allocation4 + $0x2a0] sm:$0xff]
        %v479 = vld [vmem:[#allocation4 + $0x2a8] sm:$0xff]
        %v480 = vld [vmem:[#allocation4 + $0x2b0] sm:$0xff]
        %v481 = vld [vmem:[#allocation4 + $0x2b8] sm:$0xff]
        %v482 = vld [vmem:[#allocation4 + $0x2c0] sm:$0xff]
        %v483 = vld [vmem:[#allocation4 + $0x2c8] sm:$0xff]
        %v484 = vld [vmem:[#allocation4 + $0x2d0] sm:$0xff]
        %v485 = vld [vmem:[#allocation4 + $0x2d8] sm:$0xff]
        %v486 = vld [vmem:[#allocation4 + $0x2e0] sm:$0xff]
        %v487 = vld [vmem:[#allocation4 + $0x2e8] sm:$0xff]
        %v488 = vld [vmem:[#allocation4 + $0x2f0] sm:$0xff]
        %v489 = vld [vmem:[#allocation4 + $0x2f8] sm:$0xff]
        %v490 = vld [vmem:[#allocation4 + $0x300] sm:$0xff]
        %v491 = vld [vmem:[#allocation4 + $0x308] sm:$0xff]
        %v492 = vld [vmem:[#allocation4 + $0x310] sm:$0xff]
        %v493 = vld [vmem:[#allocation4 + $0x318] sm:$0xff]
        %v494 = vld [vmem:[#allocation4 + $0x320] sm:$0xff]
        %v495 = vld [vmem:[#allocation4 + $0x328] sm:$0xff]
        %v496 = vld [vmem:[#allocation4 + $0x330] sm:$0xff]
        %v497 = vld [vmem:[#allocation4 + $0x338] sm:$0xff]
        %v498 = vld [vmem:[#allocation4 + $0x340] sm:$0xff]
        %v499 = vld [vmem:[#allocation4 + $0x348] sm:$0xff]
        %v500 = vld [vmem:[#allocation4 + $0x350] sm:$0xff]
        %v501 = vld [vmem:[#allocation4 + $0x358] sm:$0xff]
        %v502 = vld [vmem:[#allocation4 + $0x360] sm:$0xff]
        %v503 = vld [vmem:[#allocation4 + $0x368] sm:$0xff]
        %v504 = vld [vmem:[#allocation4 + $0x370] sm:$0xff]
        %v505 = vld [vmem:[#allocation4 + $0x378] sm:$0xff]
        %v506 = vld [vmem:[#allocation4 + $0x380] sm:$0xff]
        %v507 = vld [vmem:[#allocation4 + $0x388] sm:$0xff]
        %v508 = vld [vmem:[#allocation4 + $0x390] sm:$0xff]
        %v509 = vld [vmem:[#allocation4 + $0x398] sm:$0xff]
        %v510 = vld [vmem:[#allocation4 + $0x3a0] sm:$0xff]
        %v511 = vld [vmem:[#allocation4 + $0x3a8] sm:$0xff]
        %v512 = vld [vmem:[#allocation4 + $0x3b0] sm:$0xff]
        %v513 = vld [vmem:[#allocation4 + $0x3b8] sm:$0xff]
        %v514 = vld [vmem:[#allocation4 + $0x3c0] sm:$0xff]
        %v515 = vld [vmem:[#allocation4 + $0x3c8] sm:$0xff]
        %v516 = vld [vmem:[#allocation4 + $0x3d0] sm:$0xff]
        %v517 = vld [vmem:[#allocation4 + $0x3d8] sm:$0xff]
        %v518 = vld [vmem:[#allocation4 + $0x3e0] sm:$0xff]
        %v519 = vld [vmem:[#allocation4 + $0x3e8] sm:$0xff]
        %v520 = vld [vmem:[#allocation4 + $0x3f0] sm:$0xff]
        %v521 = vld [vmem:[#allocation4 + $0x3f8] sm:$0xff]
        %v522 = vld [vmem:[#allocation4 + $0x400] sm:$0xff]
        %v523 = vld [vmem:[#allocation4 + $0x408] sm:$0xff]
        %v524 = vld [vmem:[#allocation4 + $0x410] sm:$0xff]
        %v525 = vld [vmem:[#allocation4 + $0x418] sm:$0xff]
        %v526 = vld [vmem:[#allocation4 + $0x420] sm:$0xff]
        %v527 = vld [vmem:[#allocation4 + $0x428] sm:$0xff]
        %v528 = vld [vmem:[#allocation4 + $0x430] sm:$0xff]
        %v529 = vld [vmem:[#allocation4 + $0x438] sm:$0xff]
        %v530 = vld [vmem:[#allocation4 + $0x440] sm:$0xff]
        %v531 = vld [vmem:[#allocation4 + $0x448] sm:$0xff]
        %v532 = vld [vmem:[#allocation4 + $0x450] sm:$0xff]
        %v533 = vld [vmem:[#allocation4 + $0x458] sm:$0xff]
        %v534 = vld [vmem:[#allocation4 + $0x460] sm:$0xff]
        %v535 = vld [vmem:[#allocation4 + $0x468] sm:$0xff]
        %v536 = vld [vmem:[#allocation4 + $0x470] sm:$0xff]
        %v537 = vld [vmem:[#allocation4 + $0x478] sm:$0xff]
        %v538 = vld [vmem:[#allocation4 + $0x480] sm:$0xff]
        %v539 = vld [vmem:[#allocation4 + $0x488] sm:$0xff]
        %v540 = vld [vmem:[#allocation4 + $0x490] sm:$0xff]
        %v541 = vld [vmem:[#allocation4 + $0x498] sm:$0xff]
        %v542 = vld [vmem:[#allocation4 + $0x4a0] sm:$0xff]
        %v543 = vld [vmem:[#allocation4 + $0x4a8] sm:$0xff]
        %v544 = vld [vmem:[#allocation4 + $0x4b0] sm:$0xff]
        %v545 = vld [vmem:[#allocation4 + $0x4b8] sm:$0xff]
        %v546 = vld [vmem:[#allocation4 + $0x4c0] sm:$0xff]
        %v547 = vld [vmem:[#allocation4 + $0x4c8] sm:$0xff]
        %v548 = vld [vmem:[#allocation4 + $0x4d0] sm:$0xff]
        %v549 = vld [vmem:[#allocation4 + $0x4d8] sm:$0xff]
        %v550 = vld [vmem:[#allocation4 + $0x4e0] sm:$0xff]
        %v551 = vld [vmem:[#allocation4 + $0x4e8] sm:$0xff]
        %v552 = vld [vmem:[#allocation4 + $0x4f0] sm:$0xff]
        %v553 = vld [vmem:[#allocation4 + $0x4f8] sm:$0xff]
        %v554 = vld [vmem:[#allocation4 + $0x500] sm:$0xff]
        %v555 = vld [vmem:[#allocation4 + $0x508] sm:$0xff]
        %v556 = vld [vmem:[#allocation4 + $0x510] sm:$0xff]
        %v557 = vld [vmem:[#allocation4 + $0x518] sm:$0xff]
        %v558 = vld [vmem:[#allocation4 + $0x520] sm:$0xff]
        %v559 = vld [vmem:[#allocation4 + $0x528] sm:$0xff]
        %v560 = vld [vmem:[#allocation4 + $0x530] sm:$0xff]
        %v561 = vld [vmem:[#allocation4 + $0x538] sm:$0xff]
        %v562 = vld [vmem:[#allocation4 + $0x540] sm:$0xff]
        %v563 = vld [vmem:[#allocation4 + $0x548] sm:$0xff]
        %v564 = vld [vmem:[#allocation4 + $0x550] sm:$0xff]
        %v565 = vld [vmem:[#allocation4 + $0x558] sm:$0xff]
        %v566 = vld [vmem:[#allocation4 + $0x560] sm:$0xff]
        %v567 = vld [vmem:[#allocation4 + $0x568] sm:$0xff]
        %v568 = vld [vmem:[#allocation4 + $0x570] sm:$0xff]
        %v569 = vld [vmem:[#allocation4 + $0x578] sm:$0xff]
        %v570 = vld [vmem:[#allocation4 + $0x580] sm:$0xff]
        %v571 = vld [vmem:[#allocation4 + $0x588] sm:$0xff]
        %v572 = vld [vmem:[#allocation4 + $0x590] sm:$0xff]
        %v573 = vld [vmem:[#allocation4 + $0x598] sm:$0xff]
        %v574 = vld [vmem:[#allocation4 + $0x5a0] sm:$0xff]
        %v575 = vld [vmem:[#allocation4 + $0x5a8] sm:$0xff]
        %v576 = vld [vmem:[#allocation4 + $0x5b0] sm:$0xff]
        %v577 = vld [vmem:[#allocation4 + $0x5b8] sm:$0xff]
        %v578 = vld [vmem:[#allocation4 + $0x5c0] sm:$0xff]
        %v579 = vld [vmem:[#allocation4 + $0x5c8] sm:$0xff]
        %v580 = vld [vmem:[#allocation4 + $0x5d0] sm:$0xff]
        %v581 = vld [vmem:[#allocation4 + $0x5d8] sm:$0xff]
        %v582 = vld [vmem:[#allocation4 + $0x5e0] sm:$0xff]
        %v583 = vld [vmem:[#allocation4 + $0x5e8] sm:$0xff]
        %v584 = vld [vmem:[#allocation4 + $0x5f0] sm:$0xff]
        %v585 = vld [vmem:[#allocation4 + $0x5f8] sm:$0xff]
        %v586 = vld [vmem:[#allocation4 + $0x600] sm:$0xff]
        %v587 = vld [vmem:[#allocation4 + $0x608] sm:$0xff]
        %v588 = vld [vmem:[#allocation4 + $0x610] sm:$0xff]
        %v589 = vld [vmem:[#allocation4 + $0x618] sm:$0xff]
        %v590 = vld [vmem:[#allocation4 + $0x620] sm:$0xff]
        %v591 = vld [vmem:[#allocation4 + $0x628] sm:$0xff]
        %v592 = vld [vmem:[#allocation4 + $0x630] sm:$0xff]
        %v593 = vld [vmem:[#allocation4 + $0x638] sm:$0xff]
        %v594 = vld [vmem:[#allocation4 + $0x640] sm:$0xff]
        %v595 = vld [vmem:[#allocation4 + $0x648] sm:$0xff]
        %v596 = vld [vmem:[#allocation4 + $0x650] sm:$0xff]
        %v597 = vld [vmem:[#allocation4 + $0x658] sm:$0xff]
        %v598 = vld [vmem:[#allocation4 + $0x660] sm:$0xff]
        %v599 = vld [vmem:[#allocation4 + $0x668] sm:$0xff]
        %v600 = vld [vmem:[#allocation4 + $0x670] sm:$0xff]
        %v601 = vld [vmem:[#allocation4 + $0x678] sm:$0xff]
        %v602 = vld [vmem:[#allocation4 + $0x680] sm:$0xff]
        %v603 = vld [vmem:[#allocation4 + $0x688] sm:$0xff]
        %v604 = vld [vmem:[#allocation4 + $0x690] sm:$0xff]
        %v605 = vld [vmem:[#allocation4 + $0x698] sm:$0xff]
        %v606 = vld [vmem:[#allocation4 + $0x6a0] sm:$0xff]
        %v607 = vld [vmem:[#allocation4 + $0x6a8] sm:$0xff]
        %v608 = vld [vmem:[#allocation4 + $0x6b0] sm:$0xff]
        %v609 = vld [vmem:[#allocation4 + $0x6b8] sm:$0xff]
        %v610 = vld [vmem:[#allocation4 + $0x6c0] sm:$0xff]
        %v611 = vld [vmem:[#allocation4 + $0x6c8] sm:$0xff]
        %v612 = vld [vmem:[#allocation4 + $0x6d0] sm:$0xff]
        %v613 = vld [vmem:[#allocation4 + $0x6d8] sm:$0xff]
        %v614 = vld [vmem:[#allocation4 + $0x6e0] sm:$0xff]
        %v615 = vld [vmem:[#allocation4 + $0x6e8] sm:$0xff]
        %v616 = vld [vmem:[#allocation4 + $0x6f0] sm:$0xff]
        %v617 = vld [vmem:[#allocation4 + $0x6f8] sm:$0xff]
        %v618 = vld [vmem:[#allocation4 + $0x700] sm:$0xff]
        %v619 = vld [vmem:[#allocation4 + $0x708] sm:$0xff]
        %v620 = vld [vmem:[#allocation4 + $0x710] sm:$0xff]
        %v621 = vld [vmem:[#allocation4 + $0x718] sm:$0xff]
        %v622 = vld [vmem:[#allocation4 + $0x720] sm:$0xff]
        %v623 = vld [vmem:[#allocation4 + $0x728] sm:$0xff]
        %v624 = vld [vmem:[#allocation4 + $0x730] sm:$0xff]
        %v625 = vld [vmem:[#allocation4 + $0x738] sm:$0xff]
        %v626 = vld [vmem:[#allocation4 + $0x740] sm:$0xff]
        %v627 = vld [vmem:[#allocation4 + $0x748] sm:$0xff]
        %v628 = vld [vmem:[#allocation4 + $0x750] sm:$0xff]
        %v629 = vld [vmem:[#allocation4 + $0x758] sm:$0xff]
        %v630 = vld [vmem:[#allocation4 + $0x760] sm:$0xff]
        %v631 = vld [vmem:[#allocation4 + $0x768] sm:$0xff]
        %v632 = vld [vmem:[#allocation4 + $0x770] sm:$0xff]
        %v633 = vld [vmem:[#allocation4 + $0x778] sm:$0xff]
        %v634 = vld [vmem:[#allocation4 + $0x780] sm:$0xff]
        %v635 = vld [vmem:[#allocation4 + $0x788] sm:$0xff]
        %v636 = vld [vmem:[#allocation4 + $0x790] sm:$0xff]
        %v637 = vld [vmem:[#allocation4 + $0x798] sm:$0xff]
        %v638 = vld [vmem:[#allocation4 + $0x7a0] sm:$0xff]
        %v639 = vld [vmem:[#allocation4 + $0x7a8] sm:$0xff]
        %v640 = vld [vmem:[#allocation4 + $0x7b0] sm:$0xff]
        %v641 = vld [vmem:[#allocation4 + $0x7b8] sm:$0xff]
        %v642 = vld [vmem:[#allocation4 + $0x7c0] sm:$0xff]
        %v643 = vld [vmem:[#allocation4 + $0x7c8] sm:$0xff]
        %v644 = vld [vmem:[#allocation4 + $0x7d0] sm:$0xff]
        %v645 = vld [vmem:[#allocation4 + $0x7d8] sm:$0xff]
        %v646 = vld [vmem:[#allocation4 + $0x7e0] sm:$0xff]
        %v647 = vld [vmem:[#allocation4 + $0x7e8] sm:$0xff]
        %v648 = vld [vmem:[#allocation4 + $0x7f0] sm:$0xff]
        %v649 = vld [vmem:[#allocation4 + $0x7f8] sm:$0xff]
        %v650 = vld [vmem:[#allocation6] sm:$0xf]
        %v652 = vperm.slane %v650, 0
        %v653 = vperm.slane %v650, 1
        %v654 = vperm.slane %v650, 2
        %v655 = vperm.slane %v650, 3
        %v916 = vunpack.c.l.b16 %v394
        %v917 = vunpack.c.h.b16 %v394
        %v918 = vunpack.c.l.b16 %v395
        %v919 = vunpack.c.h.b16 %v395
        %v920 = vunpack.c.l.b16 %v396
        %v921 = vunpack.c.h.b16 %v396
        %v922 = vunpack.c.l.b16 %v397
        %v923 = vunpack.c.h.b16 %v397
        %v924 = vunpack.c.l.b16 %v398
        %v925 = vunpack.c.h.b16 %v398
        %v926 = vunpack.c.l.b16 %v399
        %v927 = vunpack.c.h.b16 %v399
        %v928 = vunpack.c.l.b16 %v400
        %v929 = vunpack.c.h.b16 %v400
        %v930 = vunpack.c.l.b16 %v401
        %v931 = vunpack.c.h.b16 %v401
        %v932 = vunpack.c.l.b16 %v402
        %v933 = vunpack.c.h.b16 %v402
        %v934 = vunpack.c.l.b16 %v403
        %v935 = vunpack.c.h.b16 %v403
        %v936 = vunpack.c.l.b16 %v404
        %v937 = vunpack.c.h.b16 %v404
        %v938 = vunpack.c.l.b16 %v405
        %v939 = vunpack.c.h.b16 %v405
        %v940 = vunpack.c.l.b16 %v406
        %v941 = vunpack.c.h.b16 %v406
        %v942 = vunpack.c.l.b16 %v407
        %v943 = vunpack.c.h.b16 %v407
        %v944 = vunpack.c.l.b16 %v408
        %v945 = vunpack.c.h.b16 %v408
        %v946 = vunpack.c.l.b16 %v409
        %v947 = vunpack.c.h.b16 %v409
        %v948 = vunpack.c.l.b16 %v410
        %v949 = vunpack.c.h.b16 %v410
        %v950 = vunpack.c.l.b16 %v411
        %v951 = vunpack.c.h.b16 %v411
        %v952 = vunpack.c.l.b16 %v412
        %v953 = vunpack.c.h.b16 %v412
        %v954 = vunpack.c.l.b16 %v413
        %v955 = vunpack.c.h.b16 %v413
        %v956 = vunpack.c.l.b16 %v414
        %v957 = vunpack.c.h.b16 %v414
        %v958 = vunpack.c.l.b16 %v415
        %v959 = vunpack.c.h.b16 %v415
        %v960 = vunpack.c.l.b16 %v416
        %v961 = vunpack.c.h.b16 %v416
        %v962 = vunpack.c.l.b16 %v417
        %v963 = vunpack.c.h.b16 %v417
        %v964 = vunpack.c.l.b16 %v418
        %v965 = vunpack.c.h.b16 %v418
        %v966 = vunpack.c.l.b16 %v419
        %v967 = vunpack.c.h.b16 %v419
        %v968 = vunpack.c.l.b16 %v420
        %v969 = vunpack.c.h.b16 %v420
        %v970 = vunpack.c.l.b16 %v421
        %v971 = vunpack.c.h.b16 %v421
        %v972 = vunpack.c.l.b16 %v422
        %v973 = vunpack.c.h.b16 %v422
        %v974 = vunpack.c.l.b16 %v423
        %v975 = vunpack.c.h.b16 %v423
        %v976 = vunpack.c.l.b16 %v424
        %v977 = vunpack.c.h.b16 %v424
        %v978 = vunpack.c.l.b16 %v425
        %v979 = vunpack.c.h.b16 %v425
        %v980 = vunpack.c.l.b16 %v426
        %v981 = vunpack.c.h.b16 %v426
        %v982 = vunpack.c.l.b16 %v427
        %v983 = vunpack.c.h.b16 %v427
        %v984 = vunpack.c.l.b16 %v428
        %v985 = vunpack.c.h.b16 %v428
        %v986 = vunpack.c.l.b16 %v429
        %v987 = vunpack.c.h.b16 %v429
        %v988 = vunpack.c.l.b16 %v430
        %v989 = vunpack.c.h.b16 %v430
        %v990 = vunpack.c.l.b16 %v431
        %v991 = vunpack.c.h.b16 %v431
        %v992 = vunpack.c.l.b16 %v432
        %v993 = vunpack.c.h.b16 %v432
        %v994 = vunpack.c.l.b16 %v433
        %v995 = vunpack.c.h.b16 %v433
        %v996 = vunpack.c.l.b16 %v434
        %v997 = vunpack.c.h.b16 %v434
        %v998 = vunpack.c.l.b16 %v435
        %v999 = vunpack.c.h.b16 %v435
        %v1000 = vunpack.c.l.b16 %v436
        %v1001 = vunpack.c.h.b16 %v436
        %v1002 = vunpack.c.l.b16 %v437
        %v1003 = vunpack.c.h.b16 %v437
        %v1004 = vunpack.c.l.b16 %v438
        %v1005 = vunpack.c.h.b16 %v438
        %v1006 = vunpack.c.l.b16 %v439
        %v1007 = vunpack.c.h.b16 %v439
        %v1008 = vunpack.c.l.b16 %v440
        %v1009 = vunpack.c.h.b16 %v440
        %v1010 = vunpack.c.l.b16 %v441
        %v1011 = vunpack.c.h.b16 %v441
        %v1012 = vunpack.c.l.b16 %v442
        %v1013 = vunpack.c.h.b16 %v442
        %v1014 = vunpack.c.l.b16 %v443
        %v1015 = vunpack.c.h.b16 %v443
        %v1016 = vunpack.c.l.b16 %v444
        %v1017 = vunpack.c.h.b16 %v444
        %v1018 = vunpack.c.l.b16 %v445
        %v1019 = vunpack.c.h.b16 %v445
        %v1020 = vunpack.c.l.b16 %v446
        %v1021 = vunpack.c.h.b16 %v446
        %v1022 = vunpack.c.l.b16 %v447
        %v1023 = vunpack.c.h.b16 %v447
        %v1024 = vunpack.c.l.b16 %v448
        %v1025 = vunpack.c.h.b16 %v448
        %v1026 = vunpack.c.l.b16 %v449
        %v1027 = vunpack.c.h.b16 %v449
        %v1028 = vunpack.c.l.b16 %v450
        %v1029 = vunpack.c.h.b16 %v450
        %v1030 = vunpack.c.l.b16 %v451
        %v1031 = vunpack.c.h.b16 %v451
        %v1032 = vunpack.c.l.b16 %v452
        %v1033 = vunpack.c.h.b16 %v452
        %v1034 = vunpack.c.l.b16 %v453
        %v1035 = vunpack.c.h.b16 %v453
        %v1036 = vunpack.c.l.b16 %v454
        %v1037 = vunpack.c.h.b16 %v454
        %v1038 = vunpack.c.l.b16 %v455
        %v1039 = vunpack.c.h.b16 %v455
        %v1040 = vunpack.c.l.b16 %v456
        %v1041 = vunpack.c.h.b16 %v456
        %v1042 = vunpack.c.l.b16 %v457
        %v1043 = vunpack.c.h.b16 %v457
        %v1044 = vunpack.c.l.b16 %v458
        %v1045 = vunpack.c.h.b16 %v458
        %v1046 = vunpack.c.l.b16 %v459
        %v1047 = vunpack.c.h.b16 %v459
        %v1048 = vunpack.c.l.b16 %v460
        %v1049 = vunpack.c.h.b16 %v460
        %v1050 = vunpack.c.l.b16 %v461
        %v1051 = vunpack.c.h.b16 %v461
        %v1052 = vunpack.c.l.b16 %v462
        %v1053 = vunpack.c.h.b16 %v462
        %v1054 = vunpack.c.l.b16 %v463
        %v1055 = vunpack.c.h.b16 %v463
        %v1056 = vunpack.c.l.b16 %v464
        %v1057 = vunpack.c.h.b16 %v464
        %v1058 = vunpack.c.l.b16 %v465
        %v1059 = vunpack.c.h.b16 %v465
        %v1060 = vunpack.c.l.b16 %v466
        %v1061 = vunpack.c.h.b16 %v466
        %v1062 = vunpack.c.l.b16 %v467
        %v1063 = vunpack.c.h.b16 %v467
        %v1064 = vunpack.c.l.b16 %v468
        %v1065 = vunpack.c.h.b16 %v468
        %v1066 = vunpack.c.l.b16 %v469
        %v1067 = vunpack.c.h.b16 %v469
        %v1068 = vunpack.c.l.b16 %v470
        %v1069 = vunpack.c.h.b16 %v470
        %v1070 = vunpack.c.l.b16 %v471
        %v1071 = vunpack.c.h.b16 %v471
        %v1072 = vunpack.c.l.b16 %v472
        %v1073 = vunpack.c.h.b16 %v472
        %v1074 = vunpack.c.l.b16 %v473
        %v1075 = vunpack.c.h.b16 %v473
        %v1076 = vunpack.c.l.b16 %v474
        %v1077 = vunpack.c.h.b16 %v474
        %v1078 = vunpack.c.l.b16 %v475
        %v1079 = vunpack.c.h.b16 %v475
        %v1080 = vunpack.c.l.b16 %v476
        %v1081 = vunpack.c.h.b16 %v476
        %v1082 = vunpack.c.l.b16 %v477
        %v1083 = vunpack.c.h.b16 %v477
        %v1084 = vunpack.c.l.b16 %v478
        %v1085 = vunpack.c.h.b16 %v478
        %v1086 = vunpack.c.l.b16 %v479
        %v1087 = vunpack.c.h.b16 %v479
        %v1088 = vunpack.c.l.b16 %v480
        %v1089 = vunpack.c.h.b16 %v480
        %v1090 = vunpack.c.l.b16 %v481
        %v1091 = vunpack.c.h.b16 %v481
        %v1092 = vunpack.c.l.b16 %v482
        %v1093 = vunpack.c.h.b16 %v482
        %v1094 = vunpack.c.l.b16 %v483
        %v1095 = vunpack.c.h.b16 %v483
        %v1096 = vunpack.c.l.b16 %v484
        %v1097 = vunpack.c.h.b16 %v484
        %v1098 = vunpack.c.l.b16 %v485
        %v1099 = vunpack.c.h.b16 %v485
        %v1100 = vunpack.c.l.b16 %v486
        %v1101 = vunpack.c.h.b16 %v486
        %v1102 = vunpack.c.l.b16 %v487
        %v1103 = vunpack.c.h.b16 %v487
        %v1104 = vunpack.c.l.b16 %v488
        %v1105 = vunpack.c.h.b16 %v488
        %v1106 = vunpack.c.l.b16 %v489
        %v1107 = vunpack.c.h.b16 %v489
        %v1108 = vunpack.c.l.b16 %v490
        %v1109 = vunpack.c.h.b16 %v490
        %v1110 = vunpack.c.l.b16 %v491
        %v1111 = vunpack.c.h.b16 %v491
        %v1112 = vunpack.c.l.b16 %v492
        %v1113 = vunpack.c.h.b16 %v492
        %v1114 = vunpack.c.l.b16 %v493
        %v1115 = vunpack.c.h.b16 %v493
        %v1116 = vunpack.c.l.b16 %v494
        %v1117 = vunpack.c.h.b16 %v494
        %v1118 = vunpack.c.l.b16 %v495
        %v1119 = vunpack.c.h.b16 %v495
        %v1120 = vunpack.c.l.b16 %v496
        %v1121 = vunpack.c.h.b16 %v496
        %v1122 = vunpack.c.l.b16 %v497
        %v1123 = vunpack.c.h.b16 %v497
        %v1124 = vunpack.c.l.b16 %v498
        %v1125 = vunpack.c.h.b16 %v498
        %v1126 = vunpack.c.l.b16 %v499
        %v1127 = vunpack.c.h.b16 %v499
        %v1128 = vunpack.c.l.b16 %v500
        %v1129 = vunpack.c.h.b16 %v500
        %v1130 = vunpack.c.l.b16 %v501
        %v1131 = vunpack.c.h.b16 %v501
        %v1132 = vunpack.c.l.b16 %v502
        %v1133 = vunpack.c.h.b16 %v502
        %v1134 = vunpack.c.l.b16 %v503
        %v1135 = vunpack.c.h.b16 %v503
        %v1136 = vunpack.c.l.b16 %v504
        %v1137 = vunpack.c.h.b16 %v504
        %v1138 = vunpack.c.l.b16 %v505
        %v1139 = vunpack.c.h.b16 %v505
        %v1140 = vunpack.c.l.b16 %v506
        %v1141 = vunpack.c.h.b16 %v506
        %v1142 = vunpack.c.l.b16 %v507
        %v1143 = vunpack.c.h.b16 %v507
        %v1144 = vunpack.c.l.b16 %v508
        %v1145 = vunpack.c.h.b16 %v508
        %v1146 = vunpack.c.l.b16 %v509
        %v1147 = vunpack.c.h.b16 %v509
        %v1148 = vunpack.c.l.b16 %v510
        %v1149 = vunpack.c.h.b16 %v510
        %v1150 = vunpack.c.l.b16 %v511
        %v1151 = vunpack.c.h.b16 %v511
        %v1152 = vunpack.c.l.b16 %v512
        %v1153 = vunpack.c.h.b16 %v512
        %v1154 = vunpack.c.l.b16 %v513
        %v1155 = vunpack.c.h.b16 %v513
        %v1156 = vunpack.c.l.b16 %v514
        %v1157 = vunpack.c.h.b16 %v514
        %v1158 = vunpack.c.l.b16 %v515
        %v1159 = vunpack.c.h.b16 %v515
        %v1160 = vunpack.c.l.b16 %v516
        %v1161 = vunpack.c.h.b16 %v516
        %v1162 = vunpack.c.l.b16 %v517
        %v1163 = vunpack.c.h.b16 %v517
        %v1164 = vunpack.c.l.b16 %v518
        %v1165 = vunpack.c.h.b16 %v518
        %v1166 = vunpack.c.l.b16 %v519
        %v1167 = vunpack.c.h.b16 %v519
        %v1168 = vunpack.c.l.b16 %v520
        %v1169 = vunpack.c.h.b16 %v520
        %v1170 = vunpack.c.l.b16 %v521
        %v1171 = vunpack.c.h.b16 %v521
        %v1172 = vunpack.c.l.b16 %v522
        %v1173 = vunpack.c.h.b16 %v522
        %v1174 = vunpack.c.l.b16 %v523
        %v1175 = vunpack.c.h.b16 %v523
        %v1176 = vunpack.c.l.b16 %v524
        %v1177 = vunpack.c.h.b16 %v524
        %v1178 = vunpack.c.l.b16 %v525
        %v1179 = vunpack.c.h.b16 %v525
        %v1180 = vunpack.c.l.b16 %v526
        %v1181 = vunpack.c.h.b16 %v526
        %v1182 = vunpack.c.l.b16 %v527
        %v1183 = vunpack.c.h.b16 %v527
        %v1184 = vunpack.c.l.b16 %v528
        %v1185 = vunpack.c.h.b16 %v528
        %v1186 = vunpack.c.l.b16 %v529
        %v1187 = vunpack.c.h.b16 %v529
        %v1188 = vunpack.c.l.b16 %v530
        %v1189 = vunpack.c.h.b16 %v530
        %v1190 = vunpack.c.l.b16 %v531
        %v1191 = vunpack.c.h.b16 %v531
        %v1192 = vunpack.c.l.b16 %v532
        %v1193 = vunpack.c.h.b16 %v532
        %v1194 = vunpack.c.l.b16 %v533
        %v1195 = vunpack.c.h.b16 %v533
        %v1196 = vunpack.c.l.b16 %v534
        %v1197 = vunpack.c.h.b16 %v534
        %v1198 = vunpack.c.l.b16 %v535
        %v1199 = vunpack.c.h.b16 %v535
        %v1200 = vunpack.c.l.b16 %v536
        %v1201 = vunpack.c.h.b16 %v536
        %v1202 = vunpack.c.l.b16 %v537
        %v1203 = vunpack.c.h.b16 %v537
        %v1204 = vunpack.c.l.b16 %v538
        %v1205 = vunpack.c.h.b16 %v538
        %v1206 = vunpack.c.l.b16 %v539
        %v1207 = vunpack.c.h.b16 %v539
        %v1208 = vunpack.c.l.b16 %v540
        %v1209 = vunpack.c.h.b16 %v540
        %v1210 = vunpack.c.l.b16 %v541
        %v1211 = vunpack.c.h.b16 %v541
        %v1212 = vunpack.c.l.b16 %v542
        %v1213 = vunpack.c.h.b16 %v542
        %v1214 = vunpack.c.l.b16 %v543
        %v1215 = vunpack.c.h.b16 %v543
        %v1216 = vunpack.c.l.b16 %v544
        %v1217 = vunpack.c.h.b16 %v544
        %v1218 = vunpack.c.l.b16 %v545
        %v1219 = vunpack.c.h.b16 %v545
        %v1220 = vunpack.c.l.b16 %v546
        %v1221 = vunpack.c.h.b16 %v546
        %v1222 = vunpack.c.l.b16 %v547
        %v1223 = vunpack.c.h.b16 %v547
        %v1224 = vunpack.c.l.b16 %v548
        %v1225 = vunpack.c.h.b16 %v548
        %v1226 = vunpack.c.l.b16 %v549
        %v1227 = vunpack.c.h.b16 %v549
        %v1228 = vunpack.c.l.b16 %v550
        %v1229 = vunpack.c.h.b16 %v550
        %v1230 = vunpack.c.l.b16 %v551
        %v1231 = vunpack.c.h.b16 %v551
        %v1232 = vunpack.c.l.b16 %v552
        %v1233 = vunpack.c.h.b16 %v552
        %v1234 = vunpack.c.l.b16 %v553
        %v1235 = vunpack.c.h.b16 %v553
        %v1236 = vunpack.c.l.b16 %v554
        %v1237 = vunpack.c.h.b16 %v554
        %v1238 = vunpack.c.l.b16 %v555
        %v1239 = vunpack.c.h.b16 %v555
        %v1240 = vunpack.c.l.b16 %v556
        %v1241 = vunpack.c.h.b16 %v556
        %v1242 = vunpack.c.l.b16 %v557
        %v1243 = vunpack.c.h.b16 %v557
        %v1244 = vunpack.c.l.b16 %v558
        %v1245 = vunpack.c.h.b16 %v558
        %v1246 = vunpack.c.l.b16 %v559
        %v1247 = vunpack.c.h.b16 %v559
        %v1248 = vunpack.c.l.b16 %v560
        %v1249 = vunpack.c.h.b16 %v560
        %v1250 = vunpack.c.l.b16 %v561
        %v1251 = vunpack.c.h.b16 %v561
        %v1252 = vunpack.c.l.b16 %v562
        %v1253 = vunpack.c.h.b16 %v562
        %v1254 = vunpack.c.l.b16 %v563
        %v1255 = vunpack.c.h.b16 %v563
        %v1256 = vunpack.c.l.b16 %v564
        %v1257 = vunpack.c.h.b16 %v564
        %v1258 = vunpack.c.l.b16 %v565
        %v1259 = vunpack.c.h.b16 %v565
        %v1260 = vunpack.c.l.b16 %v566
        %v1261 = vunpack.c.h.b16 %v566
        %v1262 = vunpack.c.l.b16 %v567
        %v1263 = vunpack.c.h.b16 %v567
        %v1264 = vunpack.c.l.b16 %v568
        %v1265 = vunpack.c.h.b16 %v568
        %v1266 = vunpack.c.l.b16 %v569
        %v1267 = vunpack.c.h.b16 %v569
        %v1268 = vunpack.c.l.b16 %v570
        %v1269 = vunpack.c.h.b16 %v570
        %v1270 = vunpack.c.l.b16 %v571
        %v1271 = vunpack.c.h.b16 %v571
        %v1272 = vunpack.c.l.b16 %v572
        %v1273 = vunpack.c.h.b16 %v572
        %v1274 = vunpack.c.l.b16 %v573
        %v1275 = vunpack.c.h.b16 %v573
        %v1276 = vunpack.c.l.b16 %v574
        %v1277 = vunpack.c.h.b16 %v574
        %v1278 = vunpack.c.l.b16 %v575
        %v1279 = vunpack.c.h.b16 %v575
        %v1280 = vunpack.c.l.b16 %v576
        %v1281 = vunpack.c.h.b16 %v576
        %v1282 = vunpack.c.l.b16 %v577
        %v1283 = vunpack.c.h.b16 %v577
        %v1284 = vunpack.c.l.b16 %v578
        %v1285 = vunpack.c.h.b16 %v578
        %v1286 = vunpack.c.l.b16 %v579
        %v1287 = vunpack.c.h.b16 %v579
        %v1288 = vunpack.c.l.b16 %v580
        %v1289 = vunpack.c.h.b16 %v580
        %v1290 = vunpack.c.l.b16 %v581
        %v1291 = vunpack.c.h.b16 %v581
        %v1292 = vunpack.c.l.b16 %v582
        %v1293 = vunpack.c.h.b16 %v582
        %v1294 = vunpack.c.l.b16 %v583
        %v1295 = vunpack.c.h.b16 %v583
        %v1296 = vunpack.c.l.b16 %v584
        %v1297 = vunpack.c.h.b16 %v584
        %v1298 = vunpack.c.l.b16 %v585
        %v1299 = vunpack.c.h.b16 %v585
        %v1300 = vunpack.c.l.b16 %v586
        %v1301 = vunpack.c.h.b16 %v586
        %v1302 = vunpack.c.l.b16 %v587
        %v1303 = vunpack.c.h.b16 %v587
        %v1304 = vunpack.c.l.b16 %v588
        %v1305 = vunpack.c.h.b16 %v588
        %v1306 = vunpack.c.l.b16 %v589
        %v1307 = vunpack.c.h.b16 %v589
        %v1308 = vunpack.c.l.b16 %v590
        %v1309 = vunpack.c.h.b16 %v590
        %v1310 = vunpack.c.l.b16 %v591
        %v1311 = vunpack.c.h.b16 %v591
        %v1312 = vunpack.c.l.b16 %v592
        %v1313 = vunpack.c.h.b16 %v592
        %v1314 = vunpack.c.l.b16 %v593
        %v1315 = vunpack.c.h.b16 %v593
        %v1316 = vunpack.c.l.b16 %v594
        %v1317 = vunpack.c.h.b16 %v594
        %v1318 = vunpack.c.l.b16 %v595
        %v1319 = vunpack.c.h.b16 %v595
        %v1320 = vunpack.c.l.b16 %v596
        %v1321 = vunpack.c.h.b16 %v596
        %v1322 = vunpack.c.l.b16 %v597
        %v1323 = vunpack.c.h.b16 %v597
        %v1324 = vunpack.c.l.b16 %v598
        %v1325 = vunpack.c.h.b16 %v598
        %v1326 = vunpack.c.l.b16 %v599
        %v1327 = vunpack.c.h.b16 %v599
        %v1328 = vunpack.c.l.b16 %v600
        %v1329 = vunpack.c.h.b16 %v600
        %v1330 = vunpack.c.l.b16 %v601
        %v1331 = vunpack.c.h.b16 %v601
        %v1332 = vunpack.c.l.b16 %v602
        %v1333 = vunpack.c.h.b16 %v602
        %v1334 = vunpack.c.l.b16 %v603
        %v1335 = vunpack.c.h.b16 %v603
        %v1336 = vunpack.c.l.b16 %v604
        %v1337 = vunpack.c.h.b16 %v604
        %v1338 = vunpack.c.l.b16 %v605
        %v1339 = vunpack.c.h.b16 %v605
        %v1340 = vunpack.c.l.b16 %v606
        %v1341 = vunpack.c.h.b16 %v606
        %v1342 = vunpack.c.l.b16 %v607
        %v1343 = vunpack.c.h.b16 %v607
        %v1344 = vunpack.c.l.b16 %v608
        %v1345 = vunpack.c.h.b16 %v608
        %v1346 = vunpack.c.l.b16 %v609
        %v1347 = vunpack.c.h.b16 %v609
        %v1348 = vunpack.c.l.b16 %v610
        %v1349 = vunpack.c.h.b16 %v610
        %v1350 = vunpack.c.l.b16 %v611
        %v1351 = vunpack.c.h.b16 %v611
        %v1352 = vunpack.c.l.b16 %v612
        %v1353 = vunpack.c.h.b16 %v612
        %v1354 = vunpack.c.l.b16 %v613
        %v1355 = vunpack.c.h.b16 %v613
        %v1356 = vunpack.c.l.b16 %v614
        %v1357 = vunpack.c.h.b16 %v614
        %v1358 = vunpack.c.l.b16 %v615
        %v1359 = vunpack.c.h.b16 %v615
        %v1360 = vunpack.c.l.b16 %v616
        %v1361 = vunpack.c.h.b16 %v616
        %v1362 = vunpack.c.l.b16 %v617
        %v1363 = vunpack.c.h.b16 %v617
        %v1364 = vunpack.c.l.b16 %v618
        %v1365 = vunpack.c.h.b16 %v618
        %v1366 = vunpack.c.l.b16 %v619
        %v1367 = vunpack.c.h.b16 %v619
        %v1368 = vunpack.c.l.b16 %v620
        %v1369 = vunpack.c.h.b16 %v620
        %v1370 = vunpack.c.l.b16 %v621
        %v1371 = vunpack.c.h.b16 %v621
        %v1372 = vunpack.c.l.b16 %v622
        %v1373 = vunpack.c.h.b16 %v622
        %v1374 = vunpack.c.l.b16 %v623
        %v1375 = vunpack.c.h.b16 %v623
        %v1376 = vunpack.c.l.b16 %v624
        %v1377 = vunpack.c.h.b16 %v624
        %v1378 = vunpack.c.l.b16 %v625
        %v1379 = vunpack.c.h.b16 %v625
        %v1380 = vunpack.c.l.b16 %v626
        %v1381 = vunpack.c.h.b16 %v626
        %v1382 = vunpack.c.l.b16 %v627
        %v1383 = vunpack.c.h.b16 %v627
        %v1384 = vunpack.c.l.b16 %v628
        %v1385 = vunpack.c.h.b16 %v628
        %v1386 = vunpack.c.l.b16 %v629
        %v1387 = vunpack.c.h.b16 %v629
        %v1388 = vunpack.c.l.b16 %v630
        %v1389 = vunpack.c.h.b16 %v630
        %v1390 = vunpack.c.l.b16 %v631
        %v1391 = vunpack.c.h.b16 %v631
        %v1392 = vunpack.c.l.b16 %v632
        %v1393 = vunpack.c.h.b16 %v632
        %v1394 = vunpack.c.l.b16 %v633
        %v1395 = vunpack.c.h.b16 %v633
        %v1396 = vunpack.c.l.b16 %v634
        %v1397 = vunpack.c.h.b16 %v634
        %v1398 = vunpack.c.l.b16 %v635
        %v1399 = vunpack.c.h.b16 %v635
        %v1400 = vunpack.c.l.b16 %v636
        %v1401 = vunpack.c.h.b16 %v636
        %v1402 = vunpack.c.l.b16 %v637
        %v1403 = vunpack.c.h.b16 %v637
        %v1404 = vunpack.c.l.b16 %v638
        %v1405 = vunpack.c.h.b16 %v638
        %v1406 = vunpack.c.l.b16 %v639
        %v1407 = vunpack.c.h.b16 %v639
        %v1408 = vunpack.c.l.b16 %v640
        %v1409 = vunpack.c.h.b16 %v640
        %v1410 = vunpack.c.l.b16 %v641
        %v1411 = vunpack.c.h.b16 %v641
        %v1412 = vunpack.c.l.b16 %v642
        %v1413 = vunpack.c.h.b16 %v642
        %v1414 = vunpack.c.l.b16 %v643
        %v1415 = vunpack.c.h.b16 %v643
        %v1416 = vunpack.c.l.b16 %v644
        %v1417 = vunpack.c.h.b16 %v644
        %v1418 = vunpack.c.l.b16 %v645
        %v1419 = vunpack.c.h.b16 %v645
        %v1420 = vunpack.c.l.b16 %v646
        %v1421 = vunpack.c.h.b16 %v646
        %v1422 = vunpack.c.l.b16 %v647
        %v1423 = vunpack.c.h.b16 %v647
        %v1424 = vunpack.c.l.b16 %v648
        %v1425 = vunpack.c.h.b16 %v648
        %v1426 = vunpack.c.l.b16 %v649
        %v1427 = vunpack.c.h.b16 %v649
        %v1428 = vpack.c.b16 %v920, %v916
        %v1429 = vpack.c.b16 %v921, %v917
        %v1430 = vpack.c.b16 %v922, %v918
        %v1431 = vpack.c.b16 %v923, %v919
        %v1432 = vpack.c.b16 %v928, %v924
        %v1433 = vpack.c.b16 %v929, %v925
        %v1434 = vpack.c.b16 %v930, %v926
        %v1435 = vpack.c.b16 %v931, %v927
        %v1436 = vpack.c.b16 %v936, %v932
        %v1437 = vpack.c.b16 %v937, %v933
        %v1438 = vpack.c.b16 %v938, %v934
        %v1439 = vpack.c.b16 %v939, %v935
        %v1440 = vpack.c.b16 %v944, %v940
        %v1441 = vpack.c.b16 %v945, %v941
        %v1442 = vpack.c.b16 %v946, %v942
        %v1443 = vpack.c.b16 %v947, %v943
        %v1444 = vpack.c.b16 %v952, %v948
        %v1445 = vpack.c.b16 %v953, %v949
        %v1446 = vpack.c.b16 %v954, %v950
        %v1447 = vpack.c.b16 %v955, %v951
        %v1448 = vpack.c.b16 %v960, %v956
        %v1449 = vpack.c.b16 %v961, %v957
        %v1450 = vpack.c.b16 %v962, %v958
        %v1451 = vpack.c.b16 %v963, %v959
        %v1452 = vpack.c.b16 %v968, %v964
        %v1453 = vpack.c.b16 %v969, %v965
        %v1454 = vpack.c.b16 %v970, %v966
        %v1455 = vpack.c.b16 %v971, %v967
        %v1456 = vpack.c.b16 %v976, %v972
        %v1457 = vpack.c.b16 %v977, %v973
        %v1458 = vpack.c.b16 %v978, %v974
        %v1459 = vpack.c.b16 %v979, %v975
        %v1460 = vpack.c.b16 %v984, %v980
        %v1461 = vpack.c.b16 %v985, %v981
        %v1462 = vpack.c.b16 %v986, %v982
        %v1463 = vpack.c.b16 %v987, %v983
        %v1464 = vpack.c.b16 %v992, %v988
        %v1465 = vpack.c.b16 %v993, %v989
        %v1466 = vpack.c.b16 %v994, %v990
        %v1467 = vpack.c.b16 %v995, %v991
        %v1468 = vpack.c.b16 %v1000, %v996
        %v1469 = vpack.c.b16 %v1001, %v997
        %v1470 = vpack.c.b16 %v1002, %v998
        %v1471 = vpack.c.b16 %v1003, %v999
        %v1472 = vpack.c.b16 %v1008, %v1004
        %v1473 = vpack.c.b16 %v1009, %v1005
        %v1474 = vpack.c.b16 %v1010, %v1006
        %v1475 = vpack.c.b16 %v1011, %v1007
        %v1476 = vpack.c.b16 %v1016, %v1012
        %v1477 = vpack.c.b16 %v1017, %v1013
        %v1478 = vpack.c.b16 %v1018, %v1014
        %v1479 = vpack.c.b16 %v1019, %v1015
        %v1480 = vpack.c.b16 %v1024, %v1020
        %v1481 = vpack.c.b16 %v1025, %v1021
        %v1482 = vpack.c.b16 %v1026, %v1022
        %v1483 = vpack.c.b16 %v1027, %v1023
        %v1484 = vpack.c.b16 %v1032, %v1028
        %v1485 = vpack.c.b16 %v1033, %v1029
        %v1486 = vpack.c.b16 %v1034, %v1030
        %v1487 = vpack.c.b16 %v1035, %v1031
        %v1488 = vpack.c.b16 %v1040, %v1036
        %v1489 = vpack.c.b16 %v1041, %v1037
        %v1490 = vpack.c.b16 %v1042, %v1038
        %v1491 = vpack.c.b16 %v1043, %v1039
        %v1492 = vpack.c.b16 %v1048, %v1044
        %v1493 = vpack.c.b16 %v1049, %v1045
        %v1494 = vpack.c.b16 %v1050, %v1046
        %v1495 = vpack.c.b16 %v1051, %v1047
        %v1496 = vpack.c.b16 %v1056, %v1052
        %v1497 = vpack.c.b16 %v1057, %v1053
        %v1498 = vpack.c.b16 %v1058, %v1054
        %v1499 = vpack.c.b16 %v1059, %v1055
        %v1500 = vpack.c.b16 %v1064, %v1060
        %v1501 = vpack.c.b16 %v1065, %v1061
        %v1502 = vpack.c.b16 %v1066, %v1062
        %v1503 = vpack.c.b16 %v1067, %v1063
        %v1504 = vpack.c.b16 %v1072, %v1068
        %v1505 = vpack.c.b16 %v1073, %v1069
        %v1506 = vpack.c.b16 %v1074, %v1070
        %v1507 = vpack.c.b16 %v1075, %v1071
        %v1508 = vpack.c.b16 %v1080, %v1076
        %v1509 = vpack.c.b16 %v1081, %v1077
        %v1510 = vpack.c.b16 %v1082, %v1078
        %v1511 = vpack.c.b16 %v1083, %v1079
        %v1512 = vpack.c.b16 %v1088, %v1084
        %v1513 = vpack.c.b16 %v1089, %v1085
        %v1514 = vpack.c.b16 %v1090, %v1086
        %v1515 = vpack.c.b16 %v1091, %v1087
        %v1516 = vpack.c.b16 %v1096, %v1092
        %v1517 = vpack.c.b16 %v1097, %v1093
        %v1518 = vpack.c.b16 %v1098, %v1094
        %v1519 = vpack.c.b16 %v1099, %v1095
        %v1520 = vpack.c.b16 %v1104, %v1100
        %v1521 = vpack.c.b16 %v1105, %v1101
        %v1522 = vpack.c.b16 %v1106, %v1102
        %v1523 = vpack.c.b16 %v1107, %v1103
        %v1524 = vpack.c.b16 %v1112, %v1108
        %v1525 = vpack.c.b16 %v1113, %v1109
        %v1526 = vpack.c.b16 %v1114, %v1110
        %v1527 = vpack.c.b16 %v1115, %v1111
        %v1528 = vpack.c.b16 %v1120, %v1116
        %v1529 = vpack.c.b16 %v1121, %v1117
        %v1530 = vpack.c.b16 %v1122, %v1118
        %v1531 = vpack.c.b16 %v1123, %v1119
        %v1532 = vpack.c.b16 %v1128, %v1124
        %v1533 = vpack.c.b16 %v1129, %v1125
        %v1534 = vpack.c.b16 %v1130, %v1126
        %v1535 = vpack.c.b16 %v1131, %v1127
        %v1536 = vpack.c.b16 %v1136, %v1132
        %v1537 = vpack.c.b16 %v1137, %v1133
        %v1538 = vpack.c.b16 %v1138, %v1134
        %v1539 = vpack.c.b16 %v1139, %v1135
        %v1540 = vpack.c.b16 %v1144, %v1140
        %v1541 = vpack.c.b16 %v1145, %v1141
        %v1542 = vpack.c.b16 %v1146, %v1142
        %v1543 = vpack.c.b16 %v1147, %v1143
        %v1544 = vpack.c.b16 %v1152, %v1148
        %v1545 = vpack.c.b16 %v1153, %v1149
        %v1546 = vpack.c.b16 %v1154, %v1150
        %v1547 = vpack.c.b16 %v1155, %v1151
        %v1548 = vpack.c.b16 %v1160, %v1156
        %v1549 = vpack.c.b16 %v1161, %v1157
        %v1550 = vpack.c.b16 %v1162, %v1158
        %v1551 = vpack.c.b16 %v1163, %v1159
        %v1552 = vpack.c.b16 %v1168, %v1164
        %v1553 = vpack.c.b16 %v1169, %v1165
        %v1554 = vpack.c.b16 %v1170, %v1166
        %v1555 = vpack.c.b16 %v1171, %v1167
        %v1556 = vpack.c.b16 %v1176, %v1172
        %v1557 = vpack.c.b16 %v1177, %v1173
        %v1558 = vpack.c.b16 %v1178, %v1174
        %v1559 = vpack.c.b16 %v1179, %v1175
        %v1560 = vpack.c.b16 %v1184, %v1180
        %v1561 = vpack.c.b16 %v1185, %v1181
        %v1562 = vpack.c.b16 %v1186, %v1182
        %v1563 = vpack.c.b16 %v1187, %v1183
        %v1564 = vpack.c.b16 %v1192, %v1188
        %v1565 = vpack.c.b16 %v1193, %v1189
        %v1566 = vpack.c.b16 %v1194, %v1190
        %v1567 = vpack.c.b16 %v1195, %v1191
        %v1568 = vpack.c.b16 %v1200, %v1196
        %v1569 = vpack.c.b16 %v1201, %v1197
        %v1570 = vpack.c.b16 %v1202, %v1198
        %v1571 = vpack.c.b16 %v1203, %v1199
        %v1572 = vpack.c.b16 %v1208, %v1204
        %v1573 = vpack.c.b16 %v1209, %v1205
        %v1574 = vpack.c.b16 %v1210, %v1206
        %v1575 = vpack.c.b16 %v1211, %v1207
        %v1576 = vpack.c.b16 %v1216, %v1212
        %v1577 = vpack.c.b16 %v1217, %v1213
        %v1578 = vpack.c.b16 %v1218, %v1214
        %v1579 = vpack.c.b16 %v1219, %v1215
        %v1580 = vpack.c.b16 %v1224, %v1220
        %v1581 = vpack.c.b16 %v1225, %v1221
        %v1582 = vpack.c.b16 %v1226, %v1222
        %v1583 = vpack.c.b16 %v1227, %v1223
        %v1584 = vpack.c.b16 %v1232, %v1228
        %v1585 = vpack.c.b16 %v1233, %v1229
        %v1586 = vpack.c.b16 %v1234, %v1230
        %v1587 = vpack.c.b16 %v1235, %v1231
        %v1588 = vpack.c.b16 %v1240, %v1236
        %v1589 = vpack.c.b16 %v1241, %v1237
        %v1590 = vpack.c.b16 %v1242, %v1238
        %v1591 = vpack.c.b16 %v1243, %v1239
        %v1592 = vpack.c.b16 %v1248, %v1244
        %v1593 = vpack.c.b16 %v1249, %v1245
        %v1594 = vpack.c.b16 %v1250, %v1246
        %v1595 = vpack.c.b16 %v1251, %v1247
        %v1596 = vpack.c.b16 %v1256, %v1252
        %v1597 = vpack.c.b16 %v1257, %v1253
        %v1598 = vpack.c.b16 %v1258, %v1254
        %v1599 = vpack.c.b16 %v1259, %v1255
        %v1600 = vpack.c.b16 %v1264, %v1260
        %v1601 = vpack.c.b16 %v1265, %v1261
        %v1602 = vpack.c.b16 %v1266, %v1262
        %v1603 = vpack.c.b16 %v1267, %v1263
        %v1604 = vpack.c.b16 %v1272, %v1268
        %v1605 = vpack.c.b16 %v1273, %v1269
        %v1606 = vpack.c.b16 %v1274, %v1270
        %v1607 = vpack.c.b16 %v1275, %v1271
        %v1608 = vpack.c.b16 %v1280, %v1276
        %v1609 = vpack.c.b16 %v1281, %v1277
        %v1610 = vpack.c.b16 %v1282, %v1278
        %v1611 = vpack.c.b16 %v1283, %v1279
        %v1612 = vpack.c.b16 %v1288, %v1284
        %v1613 = vpack.c.b16 %v1289, %v1285
        %v1614 = vpack.c.b16 %v1290, %v1286
        %v1615 = vpack.c.b16 %v1291, %v1287
        %v1616 = vpack.c.b16 %v1296, %v1292
        %v1617 = vpack.c.b16 %v1297, %v1293
        %v1618 = vpack.c.b16 %v1298, %v1294
        %v1619 = vpack.c.b16 %v1299, %v1295
        %v1620 = vpack.c.b16 %v1304, %v1300
        %v1621 = vpack.c.b16 %v1305, %v1301
        %v1622 = vpack.c.b16 %v1306, %v1302
        %v1623 = vpack.c.b16 %v1307, %v1303
        %v1624 = vpack.c.b16 %v1312, %v1308
        %v1625 = vpack.c.b16 %v1313, %v1309
        %v1626 = vpack.c.b16 %v1314, %v1310
        %v1627 = vpack.c.b16 %v1315, %v1311
        %v1628 = vpack.c.b16 %v1320, %v1316
        %v1629 = vpack.c.b16 %v1321, %v1317
        %v1630 = vpack.c.b16 %v1322, %v1318
        %v1631 = vpack.c.b16 %v1323, %v1319
        %v1632 = vpack.c.b16 %v1328, %v1324
        %v1633 = vpack.c.b16 %v1329, %v1325
        %v1634 = vpack.c.b16 %v1330, %v1326
        %v1635 = vpack.c.b16 %v1331, %v1327
        %v1636 = vpack.c.b16 %v1336, %v1332
        %v1637 = vpack.c.b16 %v1337, %v1333
        %v1638 = vpack.c.b16 %v1338, %v1334
        %v1639 = vpack.c.b16 %v1339, %v1335
        %v1640 = vpack.c.b16 %v1344, %v1340
        %v1641 = vpack.c.b16 %v1345, %v1341
        %v1642 = vpack.c.b16 %v1346, %v1342
        %v1643 = vpack.c.b16 %v1347, %v1343
        %v1644 = vpack.c.b16 %v1352, %v1348
        %v1645 = vpack.c.b16 %v1353, %v1349
        %v1646 = vpack.c.b16 %v1354, %v1350
        %v1647 = vpack.c.b16 %v1355, %v1351
        %v1648 = vpack.c.b16 %v1360, %v1356
        %v1649 = vpack.c.b16 %v1361, %v1357
        %v1650 = vpack.c.b16 %v1362, %v1358
        %v1651 = vpack.c.b16 %v1363, %v1359
        %v1652 = vpack.c.b16 %v1368, %v1364
        %v1653 = vpack.c.b16 %v1369, %v1365
        %v1654 = vpack.c.b16 %v1370, %v1366
        %v1655 = vpack.c.b16 %v1371, %v1367
        %v1656 = vpack.c.b16 %v1376, %v1372
        %v1657 = vpack.c.b16 %v1377, %v1373
        %v1658 = vpack.c.b16 %v1378, %v1374
        %v1659 = vpack.c.b16 %v1379, %v1375
        %v1660 = vpack.c.b16 %v1384, %v1380
        %v1661 = vpack.c.b16 %v1385, %v1381
        %v1662 = vpack.c.b16 %v1386, %v1382
        %v1663 = vpack.c.b16 %v1387, %v1383
        %v1664 = vpack.c.b16 %v1392, %v1388
        %v1665 = vpack.c.b16 %v1393, %v1389
        %v1666 = vpack.c.b16 %v1394, %v1390
        %v1667 = vpack.c.b16 %v1395, %v1391
        %v1668 = vpack.c.b16 %v1400, %v1396
        %v1669 = vpack.c.b16 %v1401, %v1397
        %v1670 = vpack.c.b16 %v1402, %v1398
        %v1671 = vpack.c.b16 %v1403, %v1399
        %v1672 = vpack.c.b16 %v1408, %v1404
        %v1673 = vpack.c.b16 %v1409, %v1405
        %v1674 = vpack.c.b16 %v1410, %v1406
        %v1675 = vpack.c.b16 %v1411, %v1407
        %v1676 = vpack.c.b16 %v1416, %v1412
        %v1677 = vpack.c.b16 %v1417, %v1413
        %v1678 = vpack.c.b16 %v1418, %v1414
        %v1679 = vpack.c.b16 %v1419, %v1415
        %v1680 = vpack.c.b16 %v1424, %v1420
        %v1681 = vpack.c.b16 %v1425, %v1421
        %v1682 = vpack.c.b16 %v1426, %v1422
        %v1683 = vpack.c.b16 %v1427, %v1423
        %1940 = vmatpush.bf16.msra.mxu0 %v1456
        %1941 = vmatpush.bf16.msra.mxu0 %v1452
        %1942 = vmatpush.bf16.msra.mxu0 %v1448
        %1943 = vmatpush.bf16.msra.mxu0 %v1444
        %1944 = vmatpush.bf16.msra.mxu0 %v1440
        %1945 = vmatpush.bf16.msra.mxu0 %v1436
        %1946 = vmatpush.bf16.msra.mxu0 %v1432
        %1947 = vmatpush.bf16.msra.mxu0 %v1428
        %1948 = vmatmul.bf16.gmra.mxu0 %v362
        %v1949 = vpop.f32.mrf.mxu0
        %v1950 = vadd.f32 %v652, %v1949
        %v1951 = vpop.f32.mrf.mxu0
        %v1952 = vadd.f32 %v652, %v1951
        %1953 = vmatmul.bf16.gmra.mxu0 %v370
        %v1954 = vpop.f32.mrf.mxu0
        %v1955 = vadd.f32 %v652, %v1954
        %v1956 = vpop.f32.mrf.mxu0
        %v1957 = vadd.f32 %v652, %v1956
        %1958 = vmatmul.bf16.gmra.mxu0 %v378
        %v1959 = vpop.f32.mrf.mxu0
        %v1960 = vadd.f32 %v652, %v1959
        %v1961 = vpop.f32.mrf.mxu0
        %v1962 = vadd.f32 %v652, %v1961
        %1963 = vmatmul.bf16.gmra.mxu0 %v386
        %v1964 = vpop.f32.mrf.mxu0
        %v1965 = vadd.f32 %v652, %v1964
        %v1966 = vpop.f32.mrf.mxu0
        %v1967 = vadd.f32 %v652, %v1966
        %1968 = vdwg.mxu0
        %1969 = vmatpush.bf16.msra.mxu0 %v1488
        %1970 = vmatpush.bf16.msra.mxu0 %v1484
        %1971 = vmatpush.bf16.msra.mxu0 %v1480
        %1972 = vmatpush.bf16.msra.mxu0 %v1476
        %1973 = vmatpush.bf16.msra.mxu0 %v1472
        %1974 = vmatpush.bf16.msra.mxu0 %v1468
        %1975 = vmatpush.bf16.msra.mxu0 %v1464
        %1976 = vmatpush.bf16.msra.mxu0 %v1460
        %1977 = vmatmul.bf16.gmra.mxu0 %v363
        %v1978 = vpop.f32.mrf.mxu0
        %v1979 = vadd.f32 %v1950, %v1978
        %v1980 = vpop.f32.mrf.mxu0
        %v1981 = vadd.f32 %v1952, %v1980
        %1982 = vmatmul.bf16.gmra.mxu0 %v371
        %v1983 = vpop.f32.mrf.mxu0
        %v1984 = vadd.f32 %v1955, %v1983
        %v1985 = vpop.f32.mrf.mxu0
        %v1986 = vadd.f32 %v1957, %v1985
        %1987 = vmatmul.bf16.gmra.mxu0 %v379
        %v1988 = vpop.f32.mrf.mxu0
        %v1989 = vadd.f32 %v1960, %v1988
        %v1990 = vpop.f32.mrf.mxu0
        %v1991 = vadd.f32 %v1962, %v1990
        %1992 = vmatmul.bf16.gmra.mxu0 %v387
        %v1993 = vpop.f32.mrf.mxu0
        %v1994 = vadd.f32 %v1965, %v1993
        %v1995 = vpop.f32.mrf.mxu0
        %v1996 = vadd.f32 %v1967, %v1995
        %1997 = vdwg.mxu0
        %1998 = vmatpush.bf16.msra.mxu0 %v1520
        %1999 = vmatpush.bf16.msra.mxu0 %v1516
        %2000 = vmatpush.bf16.msra.mxu0 %v1512
        %2001 = vmatpush.bf16.msra.mxu0 %v1508
        %2002 = vmatpush.bf16.msra.mxu0 %v1504
        %2003 = vmatpush.bf16.msra.mxu0 %v1500
        %2004 = vmatpush.bf16.msra.mxu0 %v1496
        %2005 = vmatpush.bf16.msra.mxu0 %v1492
        %2006 = vmatmul.bf16.gmra.mxu0 %v364
        %v2007 = vpop.f32.mrf.mxu0
        %v2008 = vadd.f32 %v1979, %v2007
        %v2009 = vpop.f32.mrf.mxu0
        %v2010 = vadd.f32 %v1981, %v2009
        %2011 = vmatmul.bf16.gmra.mxu0 %v372
        %v2012 = vpop.f32.mrf.mxu0
        %v2013 = vadd.f32 %v1984, %v2012
        %v2014 = vpop.f32.mrf.mxu0
        %v2015 = vadd.f32 %v1986, %v2014
        %2016 = vmatmul.bf16.gmra.mxu0 %v380
        %v2017 = vpop.f32.mrf.mxu0
        %v2018 = vadd.f32 %v1989, %v2017
        %v2019 = vpop.f32.mrf.mxu0
        %v2020 = vadd.f32 %v1991, %v2019
        %2021 = vmatmul.bf16.gmra.mxu0 %v388
        %v2022 = vpop.f32.mrf.mxu0
        %v2023 = vadd.f32 %v1994, %v2022
        %v2024 = vpop.f32.mrf.mxu0
        %v2025 = vadd.f32 %v1996, %v2024
        %2026 = vdwg.mxu0
        %2027 = vmatpush.bf16.msra.mxu0 %v1552
        %2028 = vmatpush.bf16.msra.mxu0 %v1548
        %2029 = vmatpush.bf16.msra.mxu0 %v1544
        %2030 = vmatpush.bf16.msra.mxu0 %v1540
        %2031 = vmatpush.bf16.msra.mxu0 %v1536
        %2032 = vmatpush.bf16.msra.mxu0 %v1532
        %2033 = vmatpush.bf16.msra.mxu0 %v1528
        %2034 = vmatpush.bf16.msra.mxu0 %v1524
        %2035 = vmatmul.bf16.gmra.mxu0 %v365
        %v2036 = vpop.f32.mrf.mxu0
        %v2037 = vadd.f32 %v2008, %v2036
        %v2038 = vpop.f32.mrf.mxu0
        %v2039 = vadd.f32 %v2010, %v2038
        %2040 = vmatmul.bf16.gmra.mxu0 %v373
        %v2041 = vpop.f32.mrf.mxu0
        %v2042 = vadd.f32 %v2013, %v2041
        %v2043 = vpop.f32.mrf.mxu0
        %v2044 = vadd.f32 %v2015, %v2043
        %2045 = vmatmul.bf16.gmra.mxu0 %v381
        %v2046 = vpop.f32.mrf.mxu0
        %v2047 = vadd.f32 %v2018, %v2046
        %v2048 = vpop.f32.mrf.mxu0
        %v2049 = vadd.f32 %v2020, %v2048
        %2050 = vmatmul.bf16.gmra.mxu0 %v389
        %v2051 = vpop.f32.mrf.mxu0
        %v2052 = vadd.f32 %v2023, %v2051
        %v2053 = vpop.f32.mrf.mxu0
        %v2054 = vadd.f32 %v2025, %v2053
        %2055 = vdwg.mxu0
        %2056 = vmatpush.bf16.msra.mxu0 %v1584
        %2057 = vmatpush.bf16.msra.mxu0 %v1580
        %2058 = vmatpush.bf16.msra.mxu0 %v1576
        %2059 = vmatpush.bf16.msra.mxu0 %v1572
        %2060 = vmatpush.bf16.msra.mxu0 %v1568
        %2061 = vmatpush.bf16.msra.mxu0 %v1564
        %2062 = vmatpush.bf16.msra.mxu0 %v1560
        %2063 = vmatpush.bf16.msra.mxu0 %v1556
        %2064 = vmatmul.bf16.gmra.mxu0 %v366
        %v2065 = vpop.f32.mrf.mxu0
        %v2066 = vadd.f32 %v2037, %v2065
        %v2067 = vpop.f32.mrf.mxu0
        %v2068 = vadd.f32 %v2039, %v2067
        %2069 = vmatmul.bf16.gmra.mxu0 %v374
        %v2070 = vpop.f32.mrf.mxu0
        %v2071 = vadd.f32 %v2042, %v2070
        %v2072 = vpop.f32.mrf.mxu0
        %v2073 = vadd.f32 %v2044, %v2072
        %2074 = vmatmul.bf16.gmra.mxu0 %v382
        %v2075 = vpop.f32.mrf.mxu0
        %v2076 = vadd.f32 %v2047, %v2075
        %v2077 = vpop.f32.mrf.mxu0
        %v2078 = vadd.f32 %v2049, %v2077
        %2079 = vmatmul.bf16.gmra.mxu0 %v390
        %v2080 = vpop.f32.mrf.mxu0
        %v2081 = vadd.f32 %v2052, %v2080
        %v2082 = vpop.f32.mrf.mxu0
        %v2083 = vadd.f32 %v2054, %v2082
        %2084 = vdwg.mxu0
        %2085 = vmatpush.bf16.msra.mxu0 %v1616
        %2086 = vmatpush.bf16.msra.mxu0 %v1612
        %2087 = vmatpush.bf16.msra.mxu0 %v1608
        %2088 = vmatpush.bf16.msra.mxu0 %v1604
        %2089 = vmatpush.bf16.msra.mxu0 %v1600
        %2090 = vmatpush.bf16.msra.mxu0 %v1596
        %2091 = vmatpush.bf16.msra.mxu0 %v1592
        %2092 = vmatpush.bf16.msra.mxu0 %v1588
        %2093 = vmatmul.bf16.gmra.mxu0 %v367
        %v2094 = vpop.f32.mrf.mxu0
        %v2095 = vadd.f32 %v2066, %v2094
        %v2096 = vpop.f32.mrf.mxu0
        %v2097 = vadd.f32 %v2068, %v2096
        %2098 = vmatmul.bf16.gmra.mxu0 %v375
        %v2099 = vpop.f32.mrf.mxu0
        %v2100 = vadd.f32 %v2071, %v2099
        %v2101 = vpop.f32.mrf.mxu0
        %v2102 = vadd.f32 %v2073, %v2101
        %2103 = vmatmul.bf16.gmra.mxu0 %v383
        %v2104 = vpop.f32.mrf.mxu0
        %v2105 = vadd.f32 %v2076, %v2104
        %v2106 = vpop.f32.mrf.mxu0
        %v2107 = vadd.f32 %v2078, %v2106
        %2108 = vmatmul.bf16.gmra.mxu0 %v391
        %v2109 = vpop.f32.mrf.mxu0
        %v2110 = vadd.f32 %v2081, %v2109
        %v2111 = vpop.f32.mrf.mxu0
        %v2112 = vadd.f32 %v2083, %v2111
        %2113 = vdwg.mxu0
        %2114 = vmatpush.bf16.msra.mxu0 %v1648
        %2115 = vmatpush.bf16.msra.mxu0 %v1644
        %2116 = vmatpush.bf16.msra.mxu0 %v1640
        %2117 = vmatpush.bf16.msra.mxu0 %v1636
        %2118 = vmatpush.bf16.msra.mxu0 %v1632
        %2119 = vmatpush.bf16.msra.mxu0 %v1628
        %2120 = vmatpush.bf16.msra.mxu0 %v1624
        %2121 = vmatpush.bf16.msra.mxu0 %v1620
        %2122 = vmatmul.bf16.gmra.mxu0 %v368
        %v2123 = vpop.f32.mrf.mxu0
        %v2124 = vadd.f32 %v2095, %v2123
        %v2125 = vpop.f32.mrf.mxu0
        %v2126 = vadd.f32 %v2097, %v2125
        %2127 = vmatmul.bf16.gmra.mxu0 %v376
        %v2128 = vpop.f32.mrf.mxu0
        %v2129 = vadd.f32 %v2100, %v2128
        %v2130 = vpop.f32.mrf.mxu0
        %v2131 = vadd.f32 %v2102, %v2130
        %2132 = vmatmul.bf16.gmra.mxu0 %v384
        %v2133 = vpop.f32.mrf.mxu0
        %v2134 = vadd.f32 %v2105, %v2133
        %v2135 = vpop.f32.mrf.mxu0
        %v2136 = vadd.f32 %v2107, %v2135
        %2137 = vmatmul.bf16.gmra.mxu0 %v392
        %v2138 = vpop.f32.mrf.mxu0
        %v2139 = vadd.f32 %v2110, %v2138
        %v2140 = vpop.f32.mrf.mxu0
        %v2141 = vadd.f32 %v2112, %v2140
        %2142 = vdwg.mxu0
        %2143 = vmatpush.bf16.msra.mxu0 %v1680
        %2144 = vmatpush.bf16.msra.mxu0 %v1676
        %2145 = vmatpush.bf16.msra.mxu0 %v1672
        %2146 = vmatpush.bf16.msra.mxu0 %v1668
        %2147 = vmatpush.bf16.msra.mxu0 %v1664
        %2148 = vmatpush.bf16.msra.mxu0 %v1660
        %2149 = vmatpush.bf16.msra.mxu0 %v1656
        %2150 = vmatpush.bf16.msra.mxu0 %v1652
        %2151 = vmatmul.bf16.gmra.mxu0 %v369
        %v2152 = vpop.f32.mrf.mxu0
        %v2153 = vadd.f32 %v2124, %v2152
        %v2154 = vpop.f32.mrf.mxu0
        %v2155 = vadd.f32 %v2126, %v2154
        %2156 = vmatmul.bf16.gmra.mxu0 %v377
        %v2157 = vpop.f32.mrf.mxu0
        %v2158 = vadd.f32 %v2129, %v2157
        %v2159 = vpop.f32.mrf.mxu0
        %v2160 = vadd.f32 %v2131, %v2159
        %2161 = vmatmul.bf16.gmra.mxu0 %v385
        %v2162 = vpop.f32.mrf.mxu0
        %v2163 = vadd.f32 %v2134, %v2162
        %v2164 = vpop.f32.mrf.mxu0
        %v2165 = vadd.f32 %v2136, %v2164
        %2166 = vmatmul.bf16.gmra.mxu0 %v393
        %v2167 = vpop.f32.mrf.mxu0
        %v2168 = vadd.f32 %v2139, %v2167
        %v2169 = vpop.f32.mrf.mxu0
        %v2170 = vadd.f32 %v2141, %v2169
        %2171 = vdwg.mxu0
        %2172 = vmatpush.bf16.msra.mxu0 %v1457
        %2173 = vmatpush.bf16.msra.mxu0 %v1453
        %2174 = vmatpush.bf16.msra.mxu0 %v1449
        %2175 = vmatpush.bf16.msra.mxu0 %v1445
        %2176 = vmatpush.bf16.msra.mxu0 %v1441
        %2177 = vmatpush.bf16.msra.mxu0 %v1437
        %2178 = vmatpush.bf16.msra.mxu0 %v1433
        %2179 = vmatpush.bf16.msra.mxu0 %v1429
        %2180 = vmatmul.bf16.gmra.mxu0 %v362
        %v2181 = vpop.f32.mrf.mxu0
        %v2182 = vadd.f32 %v653, %v2181
        %v2183 = vpop.f32.mrf.mxu0
        %v2184 = vadd.f32 %v653, %v2183
        %2185 = vmatmul.bf16.gmra.mxu0 %v370
        %v2186 = vpop.f32.mrf.mxu0
        %v2187 = vadd.f32 %v653, %v2186
        %v2188 = vpop.f32.mrf.mxu0
        %v2189 = vadd.f32 %v653, %v2188
        %2190 = vmatmul.bf16.gmra.mxu0 %v378
        %v2191 = vpop.f32.mrf.mxu0
        %v2192 = vadd.f32 %v653, %v2191
        %v2193 = vpop.f32.mrf.mxu0
        %v2194 = vadd.f32 %v653, %v2193
        %2195 = vmatmul.bf16.gmra.mxu0 %v386
        %v2196 = vpop.f32.mrf.mxu0
        %v2197 = vadd.f32 %v653, %v2196
        %v2198 = vpop.f32.mrf.mxu0
        %v2199 = vadd.f32 %v653, %v2198
        %2200 = vdwg.mxu0
        %2201 = vmatpush.bf16.msra.mxu0 %v1489
        %2202 = vmatpush.bf16.msra.mxu0 %v1485
        %2203 = vmatpush.bf16.msra.mxu0 %v1481
        %2204 = vmatpush.bf16.msra.mxu0 %v1477
        %2205 = vmatpush.bf16.msra.mxu0 %v1473
        %2206 = vmatpush.bf16.msra.mxu0 %v1469
        %2207 = vmatpush.bf16.msra.mxu0 %v1465
        %2208 = vmatpush.bf16.msra.mxu0 %v1461
        %2209 = vmatmul.bf16.gmra.mxu0 %v363
        %v2210 = vpop.f32.mrf.mxu0
        %v2211 = vadd.f32 %v2182, %v2210
        %v2212 = vpop.f32.mrf.mxu0
        %v2213 = vadd.f32 %v2184, %v2212
        %2214 = vmatmul.bf16.gmra.mxu0 %v371
        %v2215 = vpop.f32.mrf.mxu0
        %v2216 = vadd.f32 %v2187, %v2215
        %v2217 = vpop.f32.mrf.mxu0
        %v2218 = vadd.f32 %v2189, %v2217
        %2219 = vmatmul.bf16.gmra.mxu0 %v379
        %v2220 = vpop.f32.mrf.mxu0
        %v2221 = vadd.f32 %v2192, %v2220
        %v2222 = vpop.f32.mrf.mxu0
        %v2223 = vadd.f32 %v2194, %v2222
        %2224 = vmatmul.bf16.gmra.mxu0 %v387
        %v2225 = vpop.f32.mrf.mxu0
        %v2226 = vadd.f32 %v2197, %v2225
        %v2227 = vpop.f32.mrf.mxu0
        %v2228 = vadd.f32 %v2199, %v2227
        %2229 = vdwg.mxu0
        %2230 = vmatpush.bf16.msra.mxu0 %v1521
        %2231 = vmatpush.bf16.msra.mxu0 %v1517
        %2232 = vmatpush.bf16.msra.mxu0 %v1513
        %2233 = vmatpush.bf16.msra.mxu0 %v1509
        %2234 = vmatpush.bf16.msra.mxu0 %v1505
        %2235 = vmatpush.bf16.msra.mxu0 %v1501
        %2236 = vmatpush.bf16.msra.mxu0 %v1497
        %2237 = vmatpush.bf16.msra.mxu0 %v1493
        %2238 = vmatmul.bf16.gmra.mxu0 %v364
        %v2239 = vpop.f32.mrf.mxu0
        %v2240 = vadd.f32 %v2211, %v2239
        %v2241 = vpop.f32.mrf.mxu0
        %v2242 = vadd.f32 %v2213, %v2241
        %2243 = vmatmul.bf16.gmra.mxu0 %v372
        %v2244 = vpop.f32.mrf.mxu0
        %v2245 = vadd.f32 %v2216, %v2244
        %v2246 = vpop.f32.mrf.mxu0
        %v2247 = vadd.f32 %v2218, %v2246
        %2248 = vmatmul.bf16.gmra.mxu0 %v380
        %v2249 = vpop.f32.mrf.mxu0
        %v2250 = vadd.f32 %v2221, %v2249
        %v2251 = vpop.f32.mrf.mxu0
        %v2252 = vadd.f32 %v2223, %v2251
        %2253 = vmatmul.bf16.gmra.mxu0 %v388
        %v2254 = vpop.f32.mrf.mxu0
        %v2255 = vadd.f32 %v2226, %v2254
        %v2256 = vpop.f32.mrf.mxu0
        %v2257 = vadd.f32 %v2228, %v2256
        %2258 = vdwg.mxu0
        %2259 = vmatpush.bf16.msra.mxu0 %v1553
        %2260 = vmatpush.bf16.msra.mxu0 %v1549
        %2261 = vmatpush.bf16.msra.mxu0 %v1545
        %2262 = vmatpush.bf16.msra.mxu0 %v1541
        %2263 = vmatpush.bf16.msra.mxu0 %v1537
        %2264 = vmatpush.bf16.msra.mxu0 %v1533
        %2265 = vmatpush.bf16.msra.mxu0 %v1529
        %2266 = vmatpush.bf16.msra.mxu0 %v1525
        %2267 = vmatmul.bf16.gmra.mxu0 %v365
        %v2268 = vpop.f32.mrf.mxu0
        %v2269 = vadd.f32 %v2240, %v2268
        %v2270 = vpop.f32.mrf.mxu0
        %v2271 = vadd.f32 %v2242, %v2270
        %2272 = vmatmul.bf16.gmra.mxu0 %v373
        %v2273 = vpop.f32.mrf.mxu0
        %v2274 = vadd.f32 %v2245, %v2273
        %v2275 = vpop.f32.mrf.mxu0
        %v2276 = vadd.f32 %v2247, %v2275
        %2277 = vmatmul.bf16.gmra.mxu0 %v381
        %v2278 = vpop.f32.mrf.mxu0
        %v2279 = vadd.f32 %v2250, %v2278
        %v2280 = vpop.f32.mrf.mxu0
        %v2281 = vadd.f32 %v2252, %v2280
        %2282 = vmatmul.bf16.gmra.mxu0 %v389
        %v2283 = vpop.f32.mrf.mxu0
        %v2284 = vadd.f32 %v2255, %v2283
        %v2285 = vpop.f32.mrf.mxu0
        %v2286 = vadd.f32 %v2257, %v2285
        %2287 = vdwg.mxu0
        %2288 = vmatpush.bf16.msra.mxu0 %v1585
        %2289 = vmatpush.bf16.msra.mxu0 %v1581
        %2290 = vmatpush.bf16.msra.mxu0 %v1577
        %2291 = vmatpush.bf16.msra.mxu0 %v1573
        %2292 = vmatpush.bf16.msra.mxu0 %v1569
        %2293 = vmatpush.bf16.msra.mxu0 %v1565
        %2294 = vmatpush.bf16.msra.mxu0 %v1561
        %2295 = vmatpush.bf16.msra.mxu0 %v1557
        %2296 = vmatmul.bf16.gmra.mxu0 %v366
        %v2297 = vpop.f32.mrf.mxu0
        %v2298 = vadd.f32 %v2269, %v2297
        %v2299 = vpop.f32.mrf.mxu0
        %v2300 = vadd.f32 %v2271, %v2299
        %2301 = vmatmul.bf16.gmra.mxu0 %v374
        %v2302 = vpop.f32.mrf.mxu0
        %v2303 = vadd.f32 %v2274, %v2302
        %v2304 = vpop.f32.mrf.mxu0
        %v2305 = vadd.f32 %v2276, %v2304
        %2306 = vmatmul.bf16.gmra.mxu0 %v382
        %v2307 = vpop.f32.mrf.mxu0
        %v2308 = vadd.f32 %v2279, %v2307
        %v2309 = vpop.f32.mrf.mxu0
        %v2310 = vadd.f32 %v2281, %v2309
        %2311 = vmatmul.bf16.gmra.mxu0 %v390
        %v2312 = vpop.f32.mrf.mxu0
        %v2313 = vadd.f32 %v2284, %v2312
        %v2314 = vpop.f32.mrf.mxu0
        %v2315 = vadd.f32 %v2286, %v2314
        %2316 = vdwg.mxu0
        %2317 = vmatpush.bf16.msra.mxu0 %v1617
        %2318 = vmatpush.bf16.msra.mxu0 %v1613
        %2319 = vmatpush.bf16.msra.mxu0 %v1609
        %2320 = vmatpush.bf16.msra.mxu0 %v1605
        %2321 = vmatpush.bf16.msra.mxu0 %v1601
        %2322 = vmatpush.bf16.msra.mxu0 %v1597
        %2323 = vmatpush.bf16.msra.mxu0 %v1593
        %2324 = vmatpush.bf16.msra.mxu0 %v1589
        %2325 = vmatmul.bf16.gmra.mxu0 %v367
        %v2326 = vpop.f32.mrf.mxu0
        %v2327 = vadd.f32 %v2298, %v2326
        %v2328 = vpop.f32.mrf.mxu0
        %v2329 = vadd.f32 %v2300, %v2328
        %2330 = vmatmul.bf16.gmra.mxu0 %v375
        %v2331 = vpop.f32.mrf.mxu0
        %v2332 = vadd.f32 %v2303, %v2331
        %v2333 = vpop.f32.mrf.mxu0
        %v2334 = vadd.f32 %v2305, %v2333
        %2335 = vmatmul.bf16.gmra.mxu0 %v383
        %v2336 = vpop.f32.mrf.mxu0
        %v2337 = vadd.f32 %v2308, %v2336
        %v2338 = vpop.f32.mrf.mxu0
        %v2339 = vadd.f32 %v2310, %v2338
        %2340 = vmatmul.bf16.gmra.mxu0 %v391
        %v2341 = vpop.f32.mrf.mxu0
        %v2342 = vadd.f32 %v2313, %v2341
        %v2343 = vpop.f32.mrf.mxu0
        %v2344 = vadd.f32 %v2315, %v2343
        %2345 = vdwg.mxu0
        %2346 = vmatpush.bf16.msra.mxu0 %v1649
        %2347 = vmatpush.bf16.msra.mxu0 %v1645
        %2348 = vmatpush.bf16.msra.mxu0 %v1641
        %2349 = vmatpush.bf16.msra.mxu0 %v1637
        %2350 = vmatpush.bf16.msra.mxu0 %v1633
        %2351 = vmatpush.bf16.msra.mxu0 %v1629
        %2352 = vmatpush.bf16.msra.mxu0 %v1625
        %2353 = vmatpush.bf16.msra.mxu0 %v1621
        %2354 = vmatmul.bf16.gmra.mxu0 %v368
        %v2355 = vpop.f32.mrf.mxu0
        %v2356 = vadd.f32 %v2327, %v2355
        %v2357 = vpop.f32.mrf.mxu0
        %v2358 = vadd.f32 %v2329, %v2357
        %2359 = vmatmul.bf16.gmra.mxu0 %v376
        %v2360 = vpop.f32.mrf.mxu0
        %v2361 = vadd.f32 %v2332, %v2360
        %v2362 = vpop.f32.mrf.mxu0
        %v2363 = vadd.f32 %v2334, %v2362
        %2364 = vmatmul.bf16.gmra.mxu0 %v384
        %v2365 = vpop.f32.mrf.mxu0
        %v2366 = vadd.f32 %v2337, %v2365
        %v2367 = vpop.f32.mrf.mxu0
        %v2368 = vadd.f32 %v2339, %v2367
        %2369 = vmatmul.bf16.gmra.mxu0 %v392
        %v2370 = vpop.f32.mrf.mxu0
        %v2371 = vadd.f32 %v2342, %v2370
        %v2372 = vpop.f32.mrf.mxu0
        %v2373 = vadd.f32 %v2344, %v2372
        %2374 = vdwg.mxu0
        %2375 = vmatpush.bf16.msra.mxu0 %v1681
        %2376 = vmatpush.bf16.msra.mxu0 %v1677
        %2377 = vmatpush.bf16.msra.mxu0 %v1673
        %2378 = vmatpush.bf16.msra.mxu0 %v1669
        %2379 = vmatpush.bf16.msra.mxu0 %v1665
        %2380 = vmatpush.bf16.msra.mxu0 %v1661
        %2381 = vmatpush.bf16.msra.mxu0 %v1657
        %2382 = vmatpush.bf16.msra.mxu0 %v1653
        %2383 = vmatmul.bf16.gmra.mxu0 %v369
        %v2384 = vpop.f32.mrf.mxu0
        %v2385 = vadd.f32 %v2356, %v2384
        %v2386 = vpop.f32.mrf.mxu0
        %v2387 = vadd.f32 %v2358, %v2386
        %2388 = vmatmul.bf16.gmra.mxu0 %v377
        %v2389 = vpop.f32.mrf.mxu0
        %v2390 = vadd.f32 %v2361, %v2389
        %v2391 = vpop.f32.mrf.mxu0
        %v2392 = vadd.f32 %v2363, %v2391
        %2393 = vmatmul.bf16.gmra.mxu0 %v385
        %v2394 = vpop.f32.mrf.mxu0
        %v2395 = vadd.f32 %v2366, %v2394
        %v2396 = vpop.f32.mrf.mxu0
        %v2397 = vadd.f32 %v2368, %v2396
        %2398 = vmatmul.bf16.gmra.mxu0 %v393
        %v2399 = vpop.f32.mrf.mxu0
        %v2400 = vadd.f32 %v2371, %v2399
        %v2401 = vpop.f32.mrf.mxu0
        %v2402 = vadd.f32 %v2373, %v2401
        %2403 = vdwg.mxu0
        %2404 = vmatpush.bf16.msra.mxu0 %v1458
        %2405 = vmatpush.bf16.msra.mxu0 %v1454
        %2406 = vmatpush.bf16.msra.mxu0 %v1450
        %2407 = vmatpush.bf16.msra.mxu0 %v1446
        %2408 = vmatpush.bf16.msra.mxu0 %v1442
        %2409 = vmatpush.bf16.msra.mxu0 %v1438
        %2410 = vmatpush.bf16.msra.mxu0 %v1434
        %2411 = vmatpush.bf16.msra.mxu0 %v1430
        %2412 = vmatmul.bf16.gmra.mxu0 %v362
        %v2413 = vpop.f32.mrf.mxu0
        %v2414 = vadd.f32 %v654, %v2413
        %v2415 = vpop.f32.mrf.mxu0
        %v2416 = vadd.f32 %v654, %v2415
        %2417 = vmatmul.bf16.gmra.mxu0 %v370
        %v2418 = vpop.f32.mrf.mxu0
        %v2419 = vadd.f32 %v654, %v2418
        %v2420 = vpop.f32.mrf.mxu0
        %v2421 = vadd.f32 %v654, %v2420
        %2422 = vmatmul.bf16.gmra.mxu0 %v378
        %v2423 = vpop.f32.mrf.mxu0
        %v2424 = vadd.f32 %v654, %v2423
        %v2425 = vpop.f32.mrf.mxu0
        %v2426 = vadd.f32 %v654, %v2425
        %2427 = vmatmul.bf16.gmra.mxu0 %v386
        %v2428 = vpop.f32.mrf.mxu0
        %v2429 = vadd.f32 %v654, %v2428
        %v2430 = vpop.f32.mrf.mxu0
        %v2431 = vadd.f32 %v654, %v2430
        %2432 = vdwg.mxu0
        %2433 = vmatpush.bf16.msra.mxu0 %v1490
        %2434 = vmatpush.bf16.msra.mxu0 %v1486
        %2435 = vmatpush.bf16.msra.mxu0 %v1482
        %2436 = vmatpush.bf16.msra.mxu0 %v1478
        %2437 = vmatpush.bf16.msra.mxu0 %v1474
        %2438 = vmatpush.bf16.msra.mxu0 %v1470
        %2439 = vmatpush.bf16.msra.mxu0 %v1466
        %2440 = vmatpush.bf16.msra.mxu0 %v1462
        %2441 = vmatmul.bf16.gmra.mxu0 %v363
        %v2442 = vpop.f32.mrf.mxu0
        %v2443 = vadd.f32 %v2414, %v2442
        %v2444 = vpop.f32.mrf.mxu0
        %v2445 = vadd.f32 %v2416, %v2444
        %2446 = vmatmul.bf16.gmra.mxu0 %v371
        %v2447 = vpop.f32.mrf.mxu0
        %v2448 = vadd.f32 %v2419, %v2447
        %v2449 = vpop.f32.mrf.mxu0
        %v2450 = vadd.f32 %v2421, %v2449
        %2451 = vmatmul.bf16.gmra.mxu0 %v379
        %v2452 = vpop.f32.mrf.mxu0
        %v2453 = vadd.f32 %v2424, %v2452
        %v2454 = vpop.f32.mrf.mxu0
        %v2455 = vadd.f32 %v2426, %v2454
        %2456 = vmatmul.bf16.gmra.mxu0 %v387
        %v2457 = vpop.f32.mrf.mxu0
        %v2458 = vadd.f32 %v2429, %v2457
        %v2459 = vpop.f32.mrf.mxu0
        %v2460 = vadd.f32 %v2431, %v2459
        %2461 = vdwg.mxu0
        %2462 = vmatpush.bf16.msra.mxu0 %v1522
        %2463 = vmatpush.bf16.msra.mxu0 %v1518
        %2464 = vmatpush.bf16.msra.mxu0 %v1514
        %2465 = vmatpush.bf16.msra.mxu0 %v1510
        %2466 = vmatpush.bf16.msra.mxu0 %v1506
        %2467 = vmatpush.bf16.msra.mxu0 %v1502
        %2468 = vmatpush.bf16.msra.mxu0 %v1498
        %2469 = vmatpush.bf16.msra.mxu0 %v1494
        %2470 = vmatmul.bf16.gmra.mxu0 %v364
        %v2471 = vpop.f32.mrf.mxu0
        %v2472 = vadd.f32 %v2443, %v2471
        %v2473 = vpop.f32.mrf.mxu0
        %v2474 = vadd.f32 %v2445, %v2473
        %2475 = vmatmul.bf16.gmra.mxu0 %v372
        %v2476 = vpop.f32.mrf.mxu0
        %v2477 = vadd.f32 %v2448, %v2476
        %v2478 = vpop.f32.mrf.mxu0
        %v2479 = vadd.f32 %v2450, %v2478
        %2480 = vmatmul.bf16.gmra.mxu0 %v380
        %v2481 = vpop.f32.mrf.mxu0
        %v2482 = vadd.f32 %v2453, %v2481
        %v2483 = vpop.f32.mrf.mxu0
        %v2484 = vadd.f32 %v2455, %v2483
        %2485 = vmatmul.bf16.gmra.mxu0 %v388
        %v2486 = vpop.f32.mrf.mxu0
        %v2487 = vadd.f32 %v2458, %v2486
        %v2488 = vpop.f32.mrf.mxu0
        %v2489 = vadd.f32 %v2460, %v2488
        %2490 = vdwg.mxu0
        %2491 = vmatpush.bf16.msra.mxu0 %v1554
        %2492 = vmatpush.bf16.msra.mxu0 %v1550
        %2493 = vmatpush.bf16.msra.mxu0 %v1546
        %2494 = vmatpush.bf16.msra.mxu0 %v1542
        %2495 = vmatpush.bf16.msra.mxu0 %v1538
        %2496 = vmatpush.bf16.msra.mxu0 %v1534
        %2497 = vmatpush.bf16.msra.mxu0 %v1530
        %2498 = vmatpush.bf16.msra.mxu0 %v1526
        %2499 = vmatmul.bf16.gmra.mxu0 %v365
        %v2500 = vpop.f32.mrf.mxu0
        %v2501 = vadd.f32 %v2472, %v2500
        %v2502 = vpop.f32.mrf.mxu0
        %v2503 = vadd.f32 %v2474, %v2502
        %2504 = vmatmul.bf16.gmra.mxu0 %v373
        %v2505 = vpop.f32.mrf.mxu0
        %v2506 = vadd.f32 %v2477, %v2505
        %v2507 = vpop.f32.mrf.mxu0
        %v2508 = vadd.f32 %v2479, %v2507
        %2509 = vmatmul.bf16.gmra.mxu0 %v381
        %v2510 = vpop.f32.mrf.mxu0
        %v2511 = vadd.f32 %v2482, %v2510
        %v2512 = vpop.f32.mrf.mxu0
        %v2513 = vadd.f32 %v2484, %v2512
        %2514 = vmatmul.bf16.gmra.mxu0 %v389
        %v2515 = vpop.f32.mrf.mxu0
        %v2516 = vadd.f32 %v2487, %v2515
        %v2517 = vpop.f32.mrf.mxu0
        %v2518 = vadd.f32 %v2489, %v2517
        %2519 = vdwg.mxu0
        %2520 = vmatpush.bf16.msra.mxu0 %v1586
        %2521 = vmatpush.bf16.msra.mxu0 %v1582
        %2522 = vmatpush.bf16.msra.mxu0 %v1578
        %2523 = vmatpush.bf16.msra.mxu0 %v1574
        %2524 = vmatpush.bf16.msra.mxu0 %v1570
        %2525 = vmatpush.bf16.msra.mxu0 %v1566
        %2526 = vmatpush.bf16.msra.mxu0 %v1562
        %2527 = vmatpush.bf16.msra.mxu0 %v1558
        %2528 = vmatmul.bf16.gmra.mxu0 %v366
        %v2529 = vpop.f32.mrf.mxu0
        %v2530 = vadd.f32 %v2501, %v2529
        %v2531 = vpop.f32.mrf.mxu0
        %v2532 = vadd.f32 %v2503, %v2531
        %2533 = vmatmul.bf16.gmra.mxu0 %v374
        %v2534 = vpop.f32.mrf.mxu0
        %v2535 = vadd.f32 %v2506, %v2534
        %v2536 = vpop.f32.mrf.mxu0
        %v2537 = vadd.f32 %v2508, %v2536
        %2538 = vmatmul.bf16.gmra.mxu0 %v382
        %v2539 = vpop.f32.mrf.mxu0
        %v2540 = vadd.f32 %v2511, %v2539
        %v2541 = vpop.f32.mrf.mxu0
        %v2542 = vadd.f32 %v2513, %v2541
        %2543 = vmatmul.bf16.gmra.mxu0 %v390
        %v2544 = vpop.f32.mrf.mxu0
        %v2545 = vadd.f32 %v2516, %v2544
        %v2546 = vpop.f32.mrf.mxu0
        %v2547 = vadd.f32 %v2518, %v2546
        %2548 = vdwg.mxu0
        %2549 = vmatpush.bf16.msra.mxu0 %v1618
        %2550 = vmatpush.bf16.msra.mxu0 %v1614
        %2551 = vmatpush.bf16.msra.mxu0 %v1610
        %2552 = vmatpush.bf16.msra.mxu0 %v1606
        %2553 = vmatpush.bf16.msra.mxu0 %v1602
        %2554 = vmatpush.bf16.msra.mxu0 %v1598
        %2555 = vmatpush.bf16.msra.mxu0 %v1594
        %2556 = vmatpush.bf16.msra.mxu0 %v1590
        %2557 = vmatmul.bf16.gmra.mxu0 %v367
        %v2558 = vpop.f32.mrf.mxu0
        %v2559 = vadd.f32 %v2530, %v2558
        %v2560 = vpop.f32.mrf.mxu0
        %v2561 = vadd.f32 %v2532, %v2560
        %2562 = vmatmul.bf16.gmra.mxu0 %v375
        %v2563 = vpop.f32.mrf.mxu0
        %v2564 = vadd.f32 %v2535, %v2563
        %v2565 = vpop.f32.mrf.mxu0
        %v2566 = vadd.f32 %v2537, %v2565
        %2567 = vmatmul.bf16.gmra.mxu0 %v383
        %v2568 = vpop.f32.mrf.mxu0
        %v2569 = vadd.f32 %v2540, %v2568
        %v2570 = vpop.f32.mrf.mxu0
        %v2571 = vadd.f32 %v2542, %v2570
        %2572 = vmatmul.bf16.gmra.mxu0 %v391
        %v2573 = vpop.f32.mrf.mxu0
        %v2574 = vadd.f32 %v2545, %v2573
        %v2575 = vpop.f32.mrf.mxu0
        %v2576 = vadd.f32 %v2547, %v2575
        %2577 = vdwg.mxu0
        %2578 = vmatpush.bf16.msra.mxu0 %v1650
        %2579 = vmatpush.bf16.msra.mxu0 %v1646
        %2580 = vmatpush.bf16.msra.mxu0 %v1642
        %2581 = vmatpush.bf16.msra.mxu0 %v1638
        %2582 = vmatpush.bf16.msra.mxu0 %v1634
        %2583 = vmatpush.bf16.msra.mxu0 %v1630
        %2584 = vmatpush.bf16.msra.mxu0 %v1626
        %2585 = vmatpush.bf16.msra.mxu0 %v1622
        %2586 = vmatmul.bf16.gmra.mxu0 %v368
        %v2587 = vpop.f32.mrf.mxu0
        %v2588 = vadd.f32 %v2559, %v2587
        %v2589 = vpop.f32.mrf.mxu0
        %v2590 = vadd.f32 %v2561, %v2589
        %2591 = vmatmul.bf16.gmra.mxu0 %v376
        %v2592 = vpop.f32.mrf.mxu0
        %v2593 = vadd.f32 %v2564, %v2592
        %v2594 = vpop.f32.mrf.mxu0
        %v2595 = vadd.f32 %v2566, %v2594
        %2596 = vmatmul.bf16.gmra.mxu0 %v384
        %v2597 = vpop.f32.mrf.mxu0
        %v2598 = vadd.f32 %v2569, %v2597
        %v2599 = vpop.f32.mrf.mxu0
        %v2600 = vadd.f32 %v2571, %v2599
        %2601 = vmatmul.bf16.gmra.mxu0 %v392
        %v2602 = vpop.f32.mrf.mxu0
        %v2603 = vadd.f32 %v2574, %v2602
        %v2604 = vpop.f32.mrf.mxu0
        %v2605 = vadd.f32 %v2576, %v2604
        %2606 = vdwg.mxu0
        %2607 = vmatpush.bf16.msra.mxu0 %v1682
        %2608 = vmatpush.bf16.msra.mxu0 %v1678
        %2609 = vmatpush.bf16.msra.mxu0 %v1674
        %2610 = vmatpush.bf16.msra.mxu0 %v1670
        %2611 = vmatpush.bf16.msra.mxu0 %v1666
        %2612 = vmatpush.bf16.msra.mxu0 %v1662
        %2613 = vmatpush.bf16.msra.mxu0 %v1658
        %2614 = vmatpush.bf16.msra.mxu0 %v1654
        %2615 = vmatmul.bf16.gmra.mxu0 %v369
        %v2616 = vpop.f32.mrf.mxu0
        %v2617 = vadd.f32 %v2588, %v2616
        %v2618 = vpop.f32.mrf.mxu0
        %v2619 = vadd.f32 %v2590, %v2618
        %2620 = vmatmul.bf16.gmra.mxu0 %v377
        %v2621 = vpop.f32.mrf.mxu0
        %v2622 = vadd.f32 %v2593, %v2621
        %v2623 = vpop.f32.mrf.mxu0
        %v2624 = vadd.f32 %v2595, %v2623
        %2625 = vmatmul.bf16.gmra.mxu0 %v385
        %v2626 = vpop.f32.mrf.mxu0
        %v2627 = vadd.f32 %v2598, %v2626
        %v2628 = vpop.f32.mrf.mxu0
        %v2629 = vadd.f32 %v2600, %v2628
        %2630 = vmatmul.bf16.gmra.mxu0 %v393
        %v2631 = vpop.f32.mrf.mxu0
        %v2632 = vadd.f32 %v2603, %v2631
        %v2633 = vpop.f32.mrf.mxu0
        %v2634 = vadd.f32 %v2605, %v2633
        %2635 = vdwg.mxu0
        %2636 = vmatpush.bf16.msra.mxu0 %v1459
        %2637 = vmatpush.bf16.msra.mxu0 %v1455
        %2638 = vmatpush.bf16.msra.mxu0 %v1451
        %2639 = vmatpush.bf16.msra.mxu0 %v1447
        %2640 = vmatpush.bf16.msra.mxu0 %v1443
        %2641 = vmatpush.bf16.msra.mxu0 %v1439
        %2642 = vmatpush.bf16.msra.mxu0 %v1435
        %2643 = vmatpush.bf16.msra.mxu0 %v1431
        %2644 = vmatmul.bf16.gmra.mxu0 %v362
        %v2645 = vpop.f32.mrf.mxu0
        %v2646 = vadd.f32 %v655, %v2645
        %v2647 = vpop.f32.mrf.mxu0
        %v2648 = vadd.f32 %v655, %v2647
        %2649 = vmatmul.bf16.gmra.mxu0 %v370
        %v2650 = vpop.f32.mrf.mxu0
        %v2651 = vadd.f32 %v655, %v2650
        %v2652 = vpop.f32.mrf.mxu0
        %v2653 = vadd.f32 %v655, %v2652
        %2654 = vmatmul.bf16.gmra.mxu0 %v378
        %v2655 = vpop.f32.mrf.mxu0
        %v2656 = vadd.f32 %v655, %v2655
        %v2657 = vpop.f32.mrf.mxu0
        %v2658 = vadd.f32 %v655, %v2657
        %2659 = vmatmul.bf16.gmra.mxu0 %v386
        %v2660 = vpop.f32.mrf.mxu0
        %v2661 = vadd.f32 %v655, %v2660
        %v2662 = vpop.f32.mrf.mxu0
        %v2663 = vadd.f32 %v655, %v2662
        %2664 = vdwg.mxu0
        %2665 = vmatpush.bf16.msra.mxu0 %v1491
        %2666 = vmatpush.bf16.msra.mxu0 %v1487
        %2667 = vmatpush.bf16.msra.mxu0 %v1483
        %2668 = vmatpush.bf16.msra.mxu0 %v1479
        %2669 = vmatpush.bf16.msra.mxu0 %v1475
        %2670 = vmatpush.bf16.msra.mxu0 %v1471
        %2671 = vmatpush.bf16.msra.mxu0 %v1467
        %2672 = vmatpush.bf16.msra.mxu0 %v1463
        %2673 = vmatmul.bf16.gmra.mxu0 %v363
        %v2674 = vpop.f32.mrf.mxu0
        %v2675 = vadd.f32 %v2646, %v2674
        %v2676 = vpop.f32.mrf.mxu0
        %v2677 = vadd.f32 %v2648, %v2676
        %2678 = vmatmul.bf16.gmra.mxu0 %v371
        %v2679 = vpop.f32.mrf.mxu0
        %v2680 = vadd.f32 %v2651, %v2679
        %v2681 = vpop.f32.mrf.mxu0
        %v2682 = vadd.f32 %v2653, %v2681
        %2683 = vmatmul.bf16.gmra.mxu0 %v379
        %v2684 = vpop.f32.mrf.mxu0
        %v2685 = vadd.f32 %v2656, %v2684
        %v2686 = vpop.f32.mrf.mxu0
        %v2687 = vadd.f32 %v2658, %v2686
        %2688 = vmatmul.bf16.gmra.mxu0 %v387
        %v2689 = vpop.f32.mrf.mxu0
        %v2690 = vadd.f32 %v2661, %v2689
        %v2691 = vpop.f32.mrf.mxu0
        %v2692 = vadd.f32 %v2663, %v2691
        %2693 = vdwg.mxu0
        %2694 = vmatpush.bf16.msra.mxu0 %v1523
        %2695 = vmatpush.bf16.msra.mxu0 %v1519
        %2696 = vmatpush.bf16.msra.mxu0 %v1515
        %2697 = vmatpush.bf16.msra.mxu0 %v1511
        %2698 = vmatpush.bf16.msra.mxu0 %v1507
        %2699 = vmatpush.bf16.msra.mxu0 %v1503
        %2700 = vmatpush.bf16.msra.mxu0 %v1499
        %2701 = vmatpush.bf16.msra.mxu0 %v1495
        %2702 = vmatmul.bf16.gmra.mxu0 %v364
        %v2703 = vpop.f32.mrf.mxu0
        %v2704 = vadd.f32 %v2675, %v2703
        %v2705 = vpop.f32.mrf.mxu0
        %v2706 = vadd.f32 %v2677, %v2705
        %2707 = vmatmul.bf16.gmra.mxu0 %v372
        %v2708 = vpop.f32.mrf.mxu0
        %v2709 = vadd.f32 %v2680, %v2708
        %v2710 = vpop.f32.mrf.mxu0
        %v2711 = vadd.f32 %v2682, %v2710
        %2712 = vmatmul.bf16.gmra.mxu0 %v380
        %v2713 = vpop.f32.mrf.mxu0
        %v2714 = vadd.f32 %v2685, %v2713
        %v2715 = vpop.f32.mrf.mxu0
        %v2716 = vadd.f32 %v2687, %v2715
        %2717 = vmatmul.bf16.gmra.mxu0 %v388
        %v2718 = vpop.f32.mrf.mxu0
        %v2719 = vadd.f32 %v2690, %v2718
        %v2720 = vpop.f32.mrf.mxu0
        %v2721 = vadd.f32 %v2692, %v2720
        %2722 = vdwg.mxu0
        %2723 = vmatpush.bf16.msra.mxu0 %v1555
        %2724 = vmatpush.bf16.msra.mxu0 %v1551
        %2725 = vmatpush.bf16.msra.mxu0 %v1547
        %2726 = vmatpush.bf16.msra.mxu0 %v1543
        %2727 = vmatpush.bf16.msra.mxu0 %v1539
        %2728 = vmatpush.bf16.msra.mxu0 %v1535
        %2729 = vmatpush.bf16.msra.mxu0 %v1531
        %2730 = vmatpush.bf16.msra.mxu0 %v1527
        %2731 = vmatmul.bf16.gmra.mxu0 %v365
        %v2732 = vpop.f32.mrf.mxu0
        %v2733 = vadd.f32 %v2704, %v2732
        %v2734 = vpop.f32.mrf.mxu0
        %v2735 = vadd.f32 %v2706, %v2734
        %2736 = vmatmul.bf16.gmra.mxu0 %v373
        %v2737 = vpop.f32.mrf.mxu0
        %v2738 = vadd.f32 %v2709, %v2737
        %v2739 = vpop.f32.mrf.mxu0
        %v2740 = vadd.f32 %v2711, %v2739
        %2741 = vmatmul.bf16.gmra.mxu0 %v381
        %v2742 = vpop.f32.mrf.mxu0
        %v2743 = vadd.f32 %v2714, %v2742
        %v2744 = vpop.f32.mrf.mxu0
        %v2745 = vadd.f32 %v2716, %v2744
        %2746 = vmatmul.bf16.gmra.mxu0 %v389
        %v2747 = vpop.f32.mrf.mxu0
        %v2748 = vadd.f32 %v2719, %v2747
        %v2749 = vpop.f32.mrf.mxu0
        %v2750 = vadd.f32 %v2721, %v2749
        %2751 = vdwg.mxu0
        %2752 = vmatpush.bf16.msra.mxu0 %v1587
        %2753 = vmatpush.bf16.msra.mxu0 %v1583
        %2754 = vmatpush.bf16.msra.mxu0 %v1579
        %2755 = vmatpush.bf16.msra.mxu0 %v1575
        %2756 = vmatpush.bf16.msra.mxu0 %v1571
        %2757 = vmatpush.bf16.msra.mxu0 %v1567
        %2758 = vmatpush.bf16.msra.mxu0 %v1563
        %2759 = vmatpush.bf16.msra.mxu0 %v1559
        %2760 = vmatmul.bf16.gmra.mxu0 %v366
        %v2761 = vpop.f32.mrf.mxu0
        %v2762 = vadd.f32 %v2733, %v2761
        %v2763 = vpop.f32.mrf.mxu0
        %v2764 = vadd.f32 %v2735, %v2763
        %2765 = vmatmul.bf16.gmra.mxu0 %v374
        %v2766 = vpop.f32.mrf.mxu0
        %v2767 = vadd.f32 %v2738, %v2766
        %v2768 = vpop.f32.mrf.mxu0
        %v2769 = vadd.f32 %v2740, %v2768
        %2770 = vmatmul.bf16.gmra.mxu0 %v382
        %v2771 = vpop.f32.mrf.mxu0
        %v2772 = vadd.f32 %v2743, %v2771
        %v2773 = vpop.f32.mrf.mxu0
        %v2774 = vadd.f32 %v2745, %v2773
        %2775 = vmatmul.bf16.gmra.mxu0 %v390
        %v2776 = vpop.f32.mrf.mxu0
        %v2777 = vadd.f32 %v2748, %v2776
        %v2778 = vpop.f32.mrf.mxu0
        %v2779 = vadd.f32 %v2750, %v2778
        %2780 = vdwg.mxu0
        %2781 = vmatpush.bf16.msra.mxu0 %v1619
        %2782 = vmatpush.bf16.msra.mxu0 %v1615
        %2783 = vmatpush.bf16.msra.mxu0 %v1611
        %2784 = vmatpush.bf16.msra.mxu0 %v1607
        %2785 = vmatpush.bf16.msra.mxu0 %v1603
        %2786 = vmatpush.bf16.msra.mxu0 %v1599
        %2787 = vmatpush.bf16.msra.mxu0 %v1595
        %2788 = vmatpush.bf16.msra.mxu0 %v1591
        %2789 = vmatmul.bf16.gmra.mxu0 %v367
        %v2790 = vpop.f32.mrf.mxu0
        %v2791 = vadd.f32 %v2762, %v2790
        %v2792 = vpop.f32.mrf.mxu0
        %v2793 = vadd.f32 %v2764, %v2792
        %2794 = vmatmul.bf16.gmra.mxu0 %v375
        %v2795 = vpop.f32.mrf.mxu0
        %v2796 = vadd.f32 %v2767, %v2795
        %v2797 = vpop.f32.mrf.mxu0
        %v2798 = vadd.f32 %v2769, %v2797
        %2799 = vmatmul.bf16.gmra.mxu0 %v383
        %v2800 = vpop.f32.mrf.mxu0
        %v2801 = vadd.f32 %v2772, %v2800
        %v2802 = vpop.f32.mrf.mxu0
        %v2803 = vadd.f32 %v2774, %v2802
        %2804 = vmatmul.bf16.gmra.mxu0 %v391
        %v2805 = vpop.f32.mrf.mxu0
        %v2806 = vadd.f32 %v2777, %v2805
        %v2807 = vpop.f32.mrf.mxu0
        %v2808 = vadd.f32 %v2779, %v2807
        %2809 = vdwg.mxu0
        %2810 = vmatpush.bf16.msra.mxu0 %v1651
        %2811 = vmatpush.bf16.msra.mxu0 %v1647
        %2812 = vmatpush.bf16.msra.mxu0 %v1643
        %2813 = vmatpush.bf16.msra.mxu0 %v1639
        %2814 = vmatpush.bf16.msra.mxu0 %v1635
        %2815 = vmatpush.bf16.msra.mxu0 %v1631
        %2816 = vmatpush.bf16.msra.mxu0 %v1627
        %2817 = vmatpush.bf16.msra.mxu0 %v1623
        %2818 = vmatmul.bf16.gmra.mxu0 %v368
        %v2819 = vpop.f32.mrf.mxu0
        %v2820 = vadd.f32 %v2791, %v2819
        %v2821 = vpop.f32.mrf.mxu0
        %v2822 = vadd.f32 %v2793, %v2821
        %2823 = vmatmul.bf16.gmra.mxu0 %v376
        %v2824 = vpop.f32.mrf.mxu0
        %v2825 = vadd.f32 %v2796, %v2824
        %v2826 = vpop.f32.mrf.mxu0
        %v2827 = vadd.f32 %v2798, %v2826
        %2828 = vmatmul.bf16.gmra.mxu0 %v384
        %v2829 = vpop.f32.mrf.mxu0
        %v2830 = vadd.f32 %v2801, %v2829
        %v2831 = vpop.f32.mrf.mxu0
        %v2832 = vadd.f32 %v2803, %v2831
        %2833 = vmatmul.bf16.gmra.mxu0 %v392
        %v2834 = vpop.f32.mrf.mxu0
        %v2835 = vadd.f32 %v2806, %v2834
        %v2836 = vpop.f32.mrf.mxu0
        %v2837 = vadd.f32 %v2808, %v2836
        %2838 = vdwg.mxu0
        %2839 = vmatpush.bf16.msra.mxu0 %v1683
        %2840 = vmatpush.bf16.msra.mxu0 %v1679
        %2841 = vmatpush.bf16.msra.mxu0 %v1675
        %2842 = vmatpush.bf16.msra.mxu0 %v1671
        %2843 = vmatpush.bf16.msra.mxu0 %v1667
        %2844 = vmatpush.bf16.msra.mxu0 %v1663
        %2845 = vmatpush.bf16.msra.mxu0 %v1659
        %2846 = vmatpush.bf16.msra.mxu0 %v1655
        %2847 = vmatmul.bf16.gmra.mxu0 %v369
        %v2848 = vpop.f32.mrf.mxu0
        %v2849 = vadd.f32 %v2820, %v2848
        %v2850 = vpop.f32.mrf.mxu0
        %v2851 = vadd.f32 %v2822, %v2850
        %2852 = vmatmul.bf16.gmra.mxu0 %v377
        %v2853 = vpop.f32.mrf.mxu0
        %v2854 = vadd.f32 %v2825, %v2853
        %v2855 = vpop.f32.mrf.mxu0
        %v2856 = vadd.f32 %v2827, %v2855
        %2857 = vmatmul.bf16.gmra.mxu0 %v385
        %v2858 = vpop.f32.mrf.mxu0
        %v2859 = vadd.f32 %v2830, %v2858
        %v2860 = vpop.f32.mrf.mxu0
        %v2861 = vadd.f32 %v2832, %v2860
        %2862 = vmatmul.bf16.gmra.mxu0 %v393
        %v2863 = vpop.f32.mrf.mxu0
        %v2864 = vadd.f32 %v2835, %v2863
        %v2865 = vpop.f32.mrf.mxu0
        %v2866 = vadd.f32 %v2837, %v2865
        %2867 = vdwg.mxu0
        %v2868 = vmax.f32 %v2153, 0.0
        %v2869 = vmax.f32 %v2385, 0.0
        %v2870 = vmax.f32 %v2617, 0.0
        %v2871 = vmax.f32 %v2849, 0.0
        %v2872 = vmax.f32 %v2155, 0.0
        %v2873 = vmax.f32 %v2387, 0.0
        %v2874 = vmax.f32 %v2619, 0.0
        %v2875 = vmax.f32 %v2851, 0.0
        %v2876 = vmax.f32 %v2158, 0.0
        %v2877 = vmax.f32 %v2390, 0.0
        %v2878 = vmax.f32 %v2622, 0.0
        %v2879 = vmax.f32 %v2854, 0.0
        %v2880 = vmax.f32 %v2160, 0.0
        %v2881 = vmax.f32 %v2392, 0.0
        %v2882 = vmax.f32 %v2624, 0.0
        %v2883 = vmax.f32 %v2856, 0.0
        %v2884 = vmax.f32 %v2163, 0.0
        %v2885 = vmax.f32 %v2395, 0.0
        %v2886 = vmax.f32 %v2627, 0.0
        %v2887 = vmax.f32 %v2859, 0.0
        %v2888 = vmax.f32 %v2165, 0.0
        %v2889 = vmax.f32 %v2397, 0.0
        %v2890 = vmax.f32 %v2629, 0.0
        %v2891 = vmax.f32 %v2861, 0.0
        %v2892 = vmax.f32 %v2168, 0.0
        %v2893 = vmax.f32 %v2400, 0.0
        %v2894 = vmax.f32 %v2632, 0.0
        %v2895 = vmax.f32 %v2864, 0.0
        %v2896 = vmax.f32 %v2170, 0.0
        %v2897 = vmax.f32 %v2402, 0.0
        %v2898 = vmax.f32 %v2634, 0.0
        %v2899 = vmax.f32 %v2866, 0.0
        %v2900 = vpack.c.bf16 %v2872, %v2868
        %v2901 = vpack.c.bf16 %v2873, %v2869
        %v2902 = vpack.c.bf16 %v2874, %v2870
        %v2903 = vpack.c.bf16 %v2875, %v2871
        %v2904 = vpack.c.bf16 %v2880, %v2876
        %v2905 = vpack.c.bf16 %v2881, %v2877
        %v2906 = vpack.c.bf16 %v2882, %v2878
        %v2907 = vpack.c.bf16 %v2883, %v2879
        %v2908 = vpack.c.bf16 %v2888, %v2884
        %v2909 = vpack.c.bf16 %v2889, %v2885
        %v2910 = vpack.c.bf16 %v2890, %v2886
        %v2911 = vpack.c.bf16 %v2891, %v2887
        %v2912 = vpack.c.bf16 %v2896, %v2892
        %v2913 = vpack.c.bf16 %v2897, %v2893
        %v2914 = vpack.c.bf16 %v2898, %v2894
        %v2915 = vpack.c.bf16 %v2899, %v2895
        %v2916 = vld [vmem:[#allocation7] sm:$0xf]
        %v2917 = vld [vmem:[#allocation7 + $0x4] sm:$0xf]
        %v2918 = vld [vmem:[#allocation7 + $0x8] sm:$0xf]
        %v2919 = vld [vmem:[#allocation7 + $0xc] sm:$0xf]
        %v2920 = vld [vmem:[#allocation7 + $0x10] sm:$0xf]
        %v2921 = vld [vmem:[#allocation7 + $0x14] sm:$0xf]
        %v2922 = vld [vmem:[#allocation7 + $0x18] sm:$0xf]
        %v2923 = vld [vmem:[#allocation7 + $0x1c] sm:$0xf]
        %v2924 = vld [vmem:[#allocation7 + $0x20] sm:$0xf]
        %v2925 = vld [vmem:[#allocation7 + $0x24] sm:$0xf]
        %v2926 = vld [vmem:[#allocation7 + $0x28] sm:$0xf]
        %v2927 = vld [vmem:[#allocation7 + $0x2c] sm:$0xf]
        %v2928 = vld [vmem:[#allocation7 + $0x30] sm:$0xf]
        %v2929 = vld [vmem:[#allocation7 + $0x34] sm:$0xf]
        %v2930 = vld [vmem:[#allocation7 + $0x38] sm:$0xf]
        %v2931 = vld [vmem:[#allocation7 + $0x3c] sm:$0xf]
        %v2932 = vld [vmem:[#allocation7 + $0x40] sm:$0xf]
        %v2933 = vld [vmem:[#allocation7 + $0x44] sm:$0xf]
        %v2934 = vld [vmem:[#allocation7 + $0x48] sm:$0xf]
        %v2935 = vld [vmem:[#allocation7 + $0x4c] sm:$0xf]
        %v2936 = vld [vmem:[#allocation7 + $0x50] sm:$0xf]
        %v2937 = vld [vmem:[#allocation7 + $0x54] sm:$0xf]
        %v2938 = vld [vmem:[#allocation7 + $0x58] sm:$0xf]
        %v2939 = vld [vmem:[#allocation7 + $0x5c] sm:$0xf]
        %v2940 = vld [vmem:[#allocation7 + $0x60] sm:$0xf]
        %v2941 = vld [vmem:[#allocation7 + $0x64] sm:$0xf]
        %v2942 = vld [vmem:[#allocation7 + $0x68] sm:$0xf]
        %v2943 = vld [vmem:[#allocation7 + $0x6c] sm:$0xf]
        %v2944 = vld [vmem:[#allocation7 + $0x70] sm:$0xf]
        %v2945 = vld [vmem:[#allocation7 + $0x74] sm:$0xf]
        %v2946 = vld [vmem:[#allocation7 + $0x78] sm:$0xf]
        %v2947 = vld [vmem:[#allocation7 + $0x7c] sm:$0xf]
        %v2948 = vld [vmem:[#allocation7 + $0x80] sm:$0xf]
        %v2949 = vld [vmem:[#allocation7 + $0x84] sm:$0xf]
        %v2950 = vld [vmem:[#allocation7 + $0x88] sm:$0xf]
        %v2951 = vld [vmem:[#allocation7 + $0x8c] sm:$0xf]
        %v2952 = vld [vmem:[#allocation7 + $0x90] sm:$0xf]
        %v2953 = vld [vmem:[#allocation7 + $0x94] sm:$0xf]
        %v2954 = vld [vmem:[#allocation7 + $0x98] sm:$0xf]
        %v2955 = vld [vmem:[#allocation7 + $0x9c] sm:$0xf]
        %v2956 = vld [vmem:[#allocation7 + $0xa0] sm:$0xf]
        %v2957 = vld [vmem:[#allocation7 + $0xa4] sm:$0xf]
        %v2958 = vld [vmem:[#allocation7 + $0xa8] sm:$0xf]
        %v2959 = vld [vmem:[#allocation7 + $0xac] sm:$0xf]
        %v2960 = vld [vmem:[#allocation7 + $0xb0] sm:$0xf]
        %v2961 = vld [vmem:[#allocation7 + $0xb4] sm:$0xf]
        %v2962 = vld [vmem:[#allocation7 + $0xb8] sm:$0xf]
        %v2963 = vld [vmem:[#allocation7 + $0xbc] sm:$0xf]
        %v2964 = vld [vmem:[#allocation7 + $0xc0] sm:$0xf]
        %v2965 = vld [vmem:[#allocation7 + $0xc4] sm:$0xf]
        %v2966 = vld [vmem:[#allocation7 + $0xc8] sm:$0xf]
        %v2967 = vld [vmem:[#allocation7 + $0xcc] sm:$0xf]
        %v2968 = vld [vmem:[#allocation7 + $0xd0] sm:$0xf]
        %v2969 = vld [vmem:[#allocation7 + $0xd4] sm:$0xf]
        %v2970 = vld [vmem:[#allocation7 + $0xd8] sm:$0xf]
        %v2971 = vld [vmem:[#allocation7 + $0xdc] sm:$0xf]
        %v2972 = vld [vmem:[#allocation7 + $0xe0] sm:$0xf]
        %v2973 = vld [vmem:[#allocation7 + $0xe4] sm:$0xf]
        %v2974 = vld [vmem:[#allocation7 + $0xe8] sm:$0xf]
        %v2975 = vld [vmem:[#allocation7 + $0xec] sm:$0xf]
        %v2976 = vld [vmem:[#allocation7 + $0xf0] sm:$0xf]
        %v2977 = vld [vmem:[#allocation7 + $0xf4] sm:$0xf]
        %v2978 = vld [vmem:[#allocation7 + $0xf8] sm:$0xf]
        %v2979 = vld [vmem:[#allocation7 + $0xfc] sm:$0xf]
        %v2980 = vld [vmem:[%s4] sm:$0x1]
        %v2982 = vperm.slane %v2980, 0
        %v3048 = vunpack.c.l.b16 %v2916
        %v3049 = vunpack.c.l.b16 %v2917
        %v3050 = vunpack.c.l.b16 %v2918
        %v3051 = vunpack.c.l.b16 %v2919
        %v3052 = vunpack.c.l.b16 %v2920
        %v3053 = vunpack.c.l.b16 %v2921
        %v3054 = vunpack.c.l.b16 %v2922
        %v3055 = vunpack.c.l.b16 %v2923
        %v3056 = vunpack.c.l.b16 %v2924
        %v3057 = vunpack.c.l.b16 %v2925
        %v3058 = vunpack.c.l.b16 %v2926
        %v3059 = vunpack.c.l.b16 %v2927
        %v3060 = vunpack.c.l.b16 %v2928
        %v3061 = vunpack.c.l.b16 %v2929
        %v3062 = vunpack.c.l.b16 %v2930
        %v3063 = vunpack.c.l.b16 %v2931
        %v3064 = vunpack.c.l.b16 %v2932
        %v3065 = vunpack.c.l.b16 %v2933
        %v3066 = vunpack.c.l.b16 %v2934
        %v3067 = vunpack.c.l.b16 %v2935
        %v3068 = vunpack.c.l.b16 %v2936
        %v3069 = vunpack.c.l.b16 %v2937
        %v3070 = vunpack.c.l.b16 %v2938
        %v3071 = vunpack.c.l.b16 %v2939
        %v3072 = vunpack.c.l.b16 %v2940
        %v3073 = vunpack.c.l.b16 %v2941
        %v3074 = vunpack.c.l.b16 %v2942
        %v3075 = vunpack.c.l.b16 %v2943
        %v3076 = vunpack.c.l.b16 %v2944
        %v3077 = vunpack.c.l.b16 %v2945
        %v3078 = vunpack.c.l.b16 %v2946
        %v3079 = vunpack.c.l.b16 %v2947
        %v3080 = vunpack.c.l.b16 %v2948
        %v3081 = vunpack.c.l.b16 %v2949
        %v3082 = vunpack.c.l.b16 %v2950
        %v3083 = vunpack.c.l.b16 %v2951
        %v3084 = vunpack.c.l.b16 %v2952
        %v3085 = vunpack.c.l.b16 %v2953
        %v3086 = vunpack.c.l.b16 %v2954
        %v3087 = vunpack.c.l.b16 %v2955
        %v3088 = vunpack.c.l.b16 %v2956
        %v3089 = vunpack.c.l.b16 %v2957
        %v3090 = vunpack.c.l.b16 %v2958
        %v3091 = vunpack.c.l.b16 %v2959
        %v3092 = vunpack.c.l.b16 %v2960
        %v3093 = vunpack.c.l.b16 %v2961
        %v3094 = vunpack.c.l.b16 %v2962
        %v3095 = vunpack.c.l.b16 %v2963
        %v3096 = vunpack.c.l.b16 %v2964
        %v3097 = vunpack.c.l.b16 %v2965
        %v3098 = vunpack.c.l.b16 %v2966
        %v3099 = vunpack.c.l.b16 %v2967
        %v3100 = vunpack.c.l.b16 %v2968
        %v3101 = vunpack.c.l.b16 %v2969
        %v3102 = vunpack.c.l.b16 %v2970
        %v3103 = vunpack.c.l.b16 %v2971
        %v3104 = vunpack.c.l.b16 %v2972
        %v3105 = vunpack.c.l.b16 %v2973
        %v3106 = vunpack.c.l.b16 %v2974
        %v3107 = vunpack.c.l.b16 %v2975
        %v3108 = vunpack.c.l.b16 %v2976
        %v3109 = vunpack.c.l.b16 %v2977
        %v3110 = vunpack.c.l.b16 %v2978
        %v3111 = vunpack.c.l.b16 %v2979
        %v3112 = vpack.c.b16 %v3049, %v3048
        %v3113 = vpack.c.b16 %v3051, %v3050
        %v3114 = vpack.c.b16 %v3053, %v3052
        %v3115 = vpack.c.b16 %v3055, %v3054
        %v3116 = vpack.c.b16 %v3057, %v3056
        %v3117 = vpack.c.b16 %v3059, %v3058
        %v3118 = vpack.c.b16 %v3061, %v3060
        %v3119 = vpack.c.b16 %v3063, %v3062
        %v3120 = vpack.c.b16 %v3065, %v3064
        %v3121 = vpack.c.b16 %v3067, %v3066
        %v3122 = vpack.c.b16 %v3069, %v3068
        %v3123 = vpack.c.b16 %v3071, %v3070
        %v3124 = vpack.c.b16 %v3073, %v3072
        %v3125 = vpack.c.b16 %v3075, %v3074
        %v3126 = vpack.c.b16 %v3077, %v3076
        %v3127 = vpack.c.b16 %v3079, %v3078
        %v3128 = vpack.c.b16 %v3081, %v3080
        %v3129 = vpack.c.b16 %v3083, %v3082
        %v3130 = vpack.c.b16 %v3085, %v3084
        %v3131 = vpack.c.b16 %v3087, %v3086
        %v3132 = vpack.c.b16 %v3089, %v3088
        %v3133 = vpack.c.b16 %v3091, %v3090
        %v3134 = vpack.c.b16 %v3093, %v3092
        %v3135 = vpack.c.b16 %v3095, %v3094
        %v3136 = vpack.c.b16 %v3097, %v3096
        %v3137 = vpack.c.b16 %v3099, %v3098
        %v3138 = vpack.c.b16 %v3101, %v3100
        %v3139 = vpack.c.b16 %v3103, %v3102
        %v3140 = vpack.c.b16 %v3105, %v3104
        %v3141 = vpack.c.b16 %v3107, %v3106
        %v3142 = vpack.c.b16 %v3109, %v3108
        %v3143 = vpack.c.b16 %v3111, %v3110
        %3176 = vmatpush.bf16.msra.mxu0 %v3119
        %3177 = vmatpush.bf16.msra.mxu0 %v3118
        %3178 = vmatpush.bf16.msra.mxu0 %v3117
        %3179 = vmatpush.bf16.msra.mxu0 %v3116
        %3180 = vmatpush.bf16.msra.mxu0 %v3115
        %3181 = vmatpush.bf16.msra.mxu0 %v3114
        %3182 = vmatpush.bf16.msra.mxu0 %v3113
        %3183 = vmatpush.bf16.msra.mxu0 %v3112
        %3184 = vmatmul.bf16.gmra.mxu0 %v2900
        %v3185 = vpop.f32.mrf.mxu0
        %v3186 = vadd.f32 %v2982, %v3185
        %v3187 = vpop.f32.mrf.mxu0
        %v3188 = vadd.f32 %v2982, %v3187
        %3189 = vmatmul.bf16.gmra.mxu0 %v2904
        %v3190 = vpop.f32.mrf.mxu0
        %v3191 = vadd.f32 %v2982, %v3190
        %v3192 = vpop.f32.mrf.mxu0
        %v3193 = vadd.f32 %v2982, %v3192
        %3194 = vmatmul.bf16.gmra.mxu0 %v2908
        %v3195 = vpop.f32.mrf.mxu0
        %v3196 = vadd.f32 %v2982, %v3195
        %v3197 = vpop.f32.mrf.mxu0
        %v3198 = vadd.f32 %v2982, %v3197
        %3199 = vmatmul.bf16.gmra.mxu0 %v2912
        %v3200 = vpop.f32.mrf.mxu0
        %v3201 = vadd.f32 %v2982, %v3200
        %v3202 = vpop.f32.mrf.mxu0
        %v3203 = vadd.f32 %v2982, %v3202
        %3204 = vdwg.mxu0
        %3205 = vmatpush.bf16.msra.mxu0 %v3127
        %3206 = vmatpush.bf16.msra.mxu0 %v3126
        %3207 = vmatpush.bf16.msra.mxu0 %v3125
        %3208 = vmatpush.bf16.msra.mxu0 %v3124
        %3209 = vmatpush.bf16.msra.mxu0 %v3123
        %3210 = vmatpush.bf16.msra.mxu0 %v3122
        %3211 = vmatpush.bf16.msra.mxu0 %v3121
        %3212 = vmatpush.bf16.msra.mxu0 %v3120
        %3213 = vmatmul.bf16.gmra.mxu0 %v2901
        %v3214 = vpop.f32.mrf.mxu0
        %v3215 = vadd.f32 %v3186, %v3214
        %v3216 = vpop.f32.mrf.mxu0
        %v3217 = vadd.f32 %v3188, %v3216
        %3218 = vmatmul.bf16.gmra.mxu0 %v2905
        %v3219 = vpop.f32.mrf.mxu0
        %v3220 = vadd.f32 %v3191, %v3219
        %v3221 = vpop.f32.mrf.mxu0
        %v3222 = vadd.f32 %v3193, %v3221
        %3223 = vmatmul.bf16.gmra.mxu0 %v2909
        %v3224 = vpop.f32.mrf.mxu0
        %v3225 = vadd.f32 %v3196, %v3224
        %v3226 = vpop.f32.mrf.mxu0
        %v3227 = vadd.f32 %v3198, %v3226
        %3228 = vmatmul.bf16.gmra.mxu0 %v2913
        %v3229 = vpop.f32.mrf.mxu0
        %v3230 = vadd.f32 %v3201, %v3229
        %v3231 = vpop.f32.mrf.mxu0
        %v3232 = vadd.f32 %v3203, %v3231
        %3233 = vdwg.mxu0
        %3234 = vmatpush.bf16.msra.mxu0 %v3135
        %3235 = vmatpush.bf16.msra.mxu0 %v3134
        %3236 = vmatpush.bf16.msra.mxu0 %v3133
        %3237 = vmatpush.bf16.msra.mxu0 %v3132
        %3238 = vmatpush.bf16.msra.mxu0 %v3131
        %3239 = vmatpush.bf16.msra.mxu0 %v3130
        %3240 = vmatpush.bf16.msra.mxu0 %v3129
        %3241 = vmatpush.bf16.msra.mxu0 %v3128
        %3242 = vmatmul.bf16.gmra.mxu0 %v2902
        %v3243 = vpop.f32.mrf.mxu0
        %v3244 = vadd.f32 %v3215, %v3243
        %v3245 = vpop.f32.mrf.mxu0
        %v3246 = vadd.f32 %v3217, %v3245
        %3247 = vmatmul.bf16.gmra.mxu0 %v2906
        %v3248 = vpop.f32.mrf.mxu0
        %v3249 = vadd.f32 %v3220, %v3248
        %v3250 = vpop.f32.mrf.mxu0
        %v3251 = vadd.f32 %v3222, %v3250
        %3252 = vmatmul.bf16.gmra.mxu0 %v2910
        %v3253 = vpop.f32.mrf.mxu0
        %v3254 = vadd.f32 %v3225, %v3253
        %v3255 = vpop.f32.mrf.mxu0
        %v3256 = vadd.f32 %v3227, %v3255
        %3257 = vmatmul.bf16.gmra.mxu0 %v2914
        %v3258 = vpop.f32.mrf.mxu0
        %v3259 = vadd.f32 %v3230, %v3258
        %v3260 = vpop.f32.mrf.mxu0
        %v3261 = vadd.f32 %v3232, %v3260
        %3262 = vdwg.mxu0
        %3263 = vmatpush.bf16.msra.mxu0 %v3143
        %3264 = vmatpush.bf16.msra.mxu0 %v3142
        %3265 = vmatpush.bf16.msra.mxu0 %v3141
        %3266 = vmatpush.bf16.msra.mxu0 %v3140
        %3267 = vmatpush.bf16.msra.mxu0 %v3139
        %3268 = vmatpush.bf16.msra.mxu0 %v3138
        %3269 = vmatpush.bf16.msra.mxu0 %v3137
        %3270 = vmatpush.bf16.msra.mxu0 %v3136
        %3271 = vmatmul.bf16.gmra.mxu0 %v2903
        %v3272 = vpop.f32.mrf.mxu0
        %v3273 = vadd.f32 %v3244, %v3272
        %v3274 = vpop.f32.mrf.mxu0
        %v3275 = vadd.f32 %v3246, %v3274
        %3276 = vmatmul.bf16.gmra.mxu0 %v2907
        %v3277 = vpop.f32.mrf.mxu0
        %v3278 = vadd.f32 %v3249, %v3277
        %v3279 = vpop.f32.mrf.mxu0
        %v3280 = vadd.f32 %v3251, %v3279
        %3281 = vmatmul.bf16.gmra.mxu0 %v2911
        %v3282 = vpop.f32.mrf.mxu0
        %v3283 = vadd.f32 %v3254, %v3282
        %v3284 = vpop.f32.mrf.mxu0
        %v3285 = vadd.f32 %v3256, %v3284
        %3286 = vmatmul.bf16.gmra.mxu0 %v2915
        %v3287 = vpop.f32.mrf.mxu0
        %v3288 = vadd.f32 %v3259, %v3287
        %v3289 = vpop.f32.mrf.mxu0
        %v3290 = vadd.f32 %v3261, %v3289
        %3291 = vdwg.mxu0
        %3292 = vst [vmem:[%s296] sm:$0xff] %v3273
        %3293 = vst [vmem:[%s296 + $0x8] sm:$0xff] %v3275
        %3294 = vst [vmem:[%s296 + $0x10] sm:$0xff] %v3278
        %3295 = vst [vmem:[%s296 + $0x18] sm:$0xff] %v3280
        %3296 = vst [vmem:[%s296 + $0x20] sm:$0xff] %v3283
        %3297 = vst [vmem:[%s296 + $0x28] sm:$0xff] %v3285
        %3298 = vst [vmem:[%s296 + $0x30] sm:$0xff] %v3288
        %3299 = vst [vmem:[%s296 + $0x38] sm:$0xff] %v3290
        %s3300 = smul.u32 8, %s21
        %p3301 = scmp.lt.s32.totalorder %s3300, 15
        %s3302 = scalar_select %p3301, %s3300, 15
        %s3303 = smul.addr %s3302, 8
        %s3304 = scalar_lea.vmem %s5, %s3303
        // Predicated region
        $region57: #{simple_model_forward.1} parent=39 // pred_check
          %p3305 = pneg %p149
        $region58: #{simple_model_forward.1} parent=39 // pred_check_branch
          %3307 = sbr.rel (%p3305) target = $region60
        $region59: #{simple_model_forward.1} parent=39 // pred_region
          %s3308 = smul.u32 8, %s21
        $region60: #{simple_model_forward.1} parent=39 // pred_fallthru
          _
      $region40: #{simple_model_forward.1} parent=5 // pred_fallthru
        _
      %p3309 = scmp.le.s32.totalorder 2, %s16
      // Predicated region
      $region61: #{simple_model_forward.1} parent=5 // pred_check
        %p3310 = pneg %p3309
      $region62: #{simple_model_forward.1} parent=5 // pred_check_branch
        %3312 = sbr.rel (%p3310) target = $region64
      $region63: #{simple_model_forward.1} parent=5 // pred_region
        %s3313 = ssub.s32 %s16, 2
        // Predicated region
        $region65: #{simple_model_forward.1} parent=63 // pred_check
          %p3314 = pneg %p155
        $region66: #{simple_model_forward.1} parent=63 // pred_check_branch
          %3316 = sbr.rel (%p3314) target = $region68
        $region67: #{simple_model_forward.1} parent=63 // pred_region
          %s3317 = smul.u32 8, %s22
          %p3318 = scmp.lt.s32.totalorder %s3317, 15
          %s3319 = scalar_select %p3318, %s3317, 15
          %s3320 = smul.addr %s3319, 8
          %s3321 = scalar_lea.vmem %s5, %s3320
        $region68: #{simple_model_forward.1} parent=63 // pred_fallthru
          _
      $region64: #{simple_model_forward.1} parent=5 // pred_fallthru
        _
    $region6: #{simple_model_forward.1} parent=1 // loop_footer
      %s20 = sadd.s32 1, %s16
    $region7: #{simple_model_forward.1} parent=1 // loop_footer_branch
      %15 = sbr.rel target = $region3
    $region8: #{simple_model_forward.1} parent=1 // loop_exit
      _
    %3322 = vsyncpa [#allocation3], 1
    %s3323 = scalar_lea.sflag [#allocation3], 1
    %3324 = vsyncpa %s3323, 1
    %3325 = vsyncpa [#allocation5], 1
    %3326 = vsyncpa [#allocation8], 1

</llo_original>
